<compile_context>
chip_gen: v7x
topology: tpu7x:2x2x1
jax: 0.10.0
libtpu: 0.0.40
codegen_flags: <defaults>
</compile_context>

<pallas_src>
import jax
import jax.numpy as jnp
from jax.experimental import pallas as pl
from jax.experimental.pallas import tpu as pltpu

_BN_EPS = 1e-5
_LANE = 128                                     # lane-dense padding for feature-like dims
_NODE_PAD = 512                                 # node count padded to a multiple of this
_TM_CANDIDATES = (512, 256, 128)                # node-row tile (output rows of (A+I)@X)
_TK_CANDIDATES = (2048, 1024, 512, 256, 128)    # reduction tile over A columns / X rows


def _round_up(v, m):
    return ((v + m - 1) // m) * m


def _pad_to(x, shape):
    return jnp.pad(x, [(0, s - d) for d, s in zip(x.shape, shape)])


def _pick_tm(n_pad):
    # Largest row tile that still yields >= 2 row tiles, so the "parallel" grid axis can
    # actually split across the two TensorCores on v7x; fall back to the whole array.
    for c in _TM_CANDIDATES:
        if n_pad % c == 0 and n_pad // c >= 2:
            return c
    return n_pad


def _pick_tk(n_pad):
    for c in _TK_CANDIDATES:
        if n_pad % c == 0:
            return c
    return n_pad


# ----------------------------- Pallas kernels -----------------------------


def _gin_layer_kernel(a_ref, x_ref, w1_ref, b1_ref, w2_ref, b2_ref, pool_ref,
                      h_ref, pooled_ref, acc_ref):
    k = pl.program_id(1)

    @pl.when(k == 0)
    def _init():
        acc_ref[...] = jnp.zeros_like(acc_ref)

    # bf16 x bf16 MXU matmul (self-loops are already folded into A), f32 accumulation.
    acc_ref[...] += jnp.dot(a_ref[...], x_ref[...],
                            preferred_element_type=jnp.float32)

    @pl.when(k == pl.num_programs(1) - 1)
    def _epilogue():
        agg = acc_ref[...].astype(jnp.bfloat16)
        h = jnp.dot(agg, w1_ref[...], preferred_element_type=jnp.float32) + b1_ref[...]
        h = jnp.maximum(h, 0.0).astype(jnp.bfloat16)
        # W2/b2 carry the folded BatchNorm scale 1/sqrt(1+eps) (eval mode, fresh stats);
        # ReLU commutes with the positive scale, so this equals BN(ReLU(.)).
        h = jnp.dot(h, w2_ref[...], preferred_element_type=jnp.float32) + b2_ref[...]
        h = jnp.maximum(h, 0.0).astype(h_ref.dtype)
        h_ref[...] = h
        # Fused global_add_pool partial for this row tile: (G_pad, tm) @ (tm, H_pad).
        pooled_ref[...] = jnp.dot(pool_ref[...], h, preferred_element_type=jnp.float32)


def gin_layer(a, x, pool, w1, b1, w2, b2):
    """One fused GIN layer: relu(BN(relu(((A+I)@X)@W1 + b1)@W2 + b2)) plus fused pooling.

    a:    (n_pad, n_pad) bf16 adjacency WITH self-loops
    x:    (n_pad, f_pad) bf16 node features
    pool: (g_pad, n_pad) bf16 one-hot pooling matrix
    w1/w2 bf16, b1/b2 f32 (BatchNorm folded into w2/b2)
    Returns h (n_pad, h_pad) bf16 and pooled (g_pad, h_pad) f32.
    """
    n_pad = a.shape[0]
    f_pad = x.shape[1]
    h_pad = w2.shape[1]
    g_pad = pool.shape[0]
    tm = _pick_tm(n_pad)
    tk = _pick_tk(n_pad)
    assert n_pad % tm == 0 and n_pad % tk == 0
    grid = (n_pad // tm, n_pad // tk)

    h_out, pooled_parts = pl.pallas_call(
        _gin_layer_kernel,
        out_shape=(
            jax.ShapeDtypeStruct((n_pad, h_pad), jnp.bfloat16),
            jax.ShapeDtypeStruct((grid[0], g_pad, h_pad), jnp.float32),
        ),
        grid_spec=pltpu.PrefetchScalarGridSpec(
            num_scalar_prefetch=0,
            grid=grid,
            in_specs=[
                pl.BlockSpec((tm, tk), lambda i, k: (i, k)),         # A tile (bf16)
                pl.BlockSpec((tk, f_pad), lambda i, k: (k, 0)),      # X reduction tile (bf16)
                pl.BlockSpec((f_pad, h_pad), lambda i, k: (0, 0)),   # W1 (bf16, resident)
                pl.BlockSpec((1, h_pad), lambda i, k: (0, 0)),       # b1 (f32)
                pl.BlockSpec((h_pad, h_pad), lambda i, k: (0, 0)),   # W2 (bf16, BN folded, resident)
                pl.BlockSpec((1, h_pad), lambda i, k: (0, 0)),       # b2 (f32)
                pl.BlockSpec((g_pad, tm), lambda i, k: (0, i)),      # pooling columns for this row tile
            ],
            out_specs=[
                pl.BlockSpec((tm, h_pad), lambda i, k: (i, 0)),
                pl.BlockSpec((None, g_pad, h_pad), lambda i, k: (i, 0, 0)),
            ],
            scratch_shapes=[pltpu.VMEM((tm, f_pad), jnp.float32)],
        ),
        compiler_params=pltpu.CompilerParams(
            dimension_semantics=("parallel", "arbitrary"),
            vmem_limit_bytes=48 * 1024 * 1024,
        ),
    )(a, x, w1, b1, w2, b2, pool)

    # Sum per-row-tile pooling partials (tiny: (n_tiles, G_pad, H_pad)).
    pooled = jnp.sum(pooled_parts, axis=0)
    return h_out, pooled


# ----------------------------- parameter setup -----------------------------


def xavier_uniform(key, fan_in, fan_out):
    # matches torch.nn.init.xavier_uniform_ (gain=1); stored as (fan_in, fan_out)
    limit = (6.0 / (fan_in + fan_out)) ** 0.5
    return jax.random.uniform(key, (fan_in, fan_out), jnp.float32, -limit, limit)


def init_simclr_params(key, num_features, hidden_dim, num_gc_layers, nmb_prototypes):
    f_pad0 = _round_up(max(num_features, 1), _LANE)
    h_pad = _round_up(hidden_dim, _LANE)
    bn_scale = (1.0 + _BN_EPS) ** -0.5   # BatchNorm1d eval with fresh stats, folded into W2/b2

    gin = []
    for i in range(num_gc_layers):
        fin, fin_pad = (num_features, f_pad0) if i == 0 else (hidden_dim, h_pad)
        key, k1, k2 = jax.random.split(key, 3)
        w1 = _pad_to(xavier_uniform(k1, fin, hidden_dim), (fin_pad, h_pad)).astype(jnp.bfloat16)
        b1 = jnp.zeros((1, h_pad), jnp.float32)                        # bias filled with 0 in init_emb
        w2 = (_pad_to(xavier_uniform(k2, hidden_dim, hidden_dim), (h_pad, h_pad))
              * bn_scale).astype(jnp.bfloat16)
        b2 = jnp.zeros((1, h_pad), jnp.float32)                        # 0 * bn_scale == 0
        gin.append(dict(w1=w1, b1=b1, w2=w2, b2=b2))

    d = hidden_dim * num_gc_layers
    proto_w = None
    if nmb_prototypes:
        ws = []
        for kp in nmb_prototypes:
            key, kk = jax.random.split(key)
            ws.append(xavier_uniform(kk, d, kp))
        proto_w = jnp.concatenate(ws, axis=1)            # all bias-free heads fused: (D, sum(k))

    return dict(
        gin=gin,
        proto_w=proto_w,
        proto_sizes=tuple(nmb_prototypes) if nmb_prototypes else (),
        hidden_dim=hidden_dim,
        num_features=num_features,
        f_pad=f_pad0,
        h_pad=h_pad,
        d=d,
    )


# ----------------------------- forward (glue + kernels) -----------------------------


def simclr_forward(params, x, edge_index, batch, num_graphs):
    n, f = x.shape
    hidden = params["hidden_dim"]
    n_pad = _round_up(n, _NODE_PAD)
    g_pad = _round_up(num_graphs, 16)

    # Dense adjacency WITH self-loops, scattered directly into bf16 (exact for small
    # integer edge multiplicities).  A[dst, src] += 1 per directed edge; padded nodes
    # stay all-zero.
    src, dst = edge_index[0], edge_index[1]
    ones_e = jnp.ones(src.shape, jnp.bfloat16)
    node_ids = jnp.arange(n, dtype=jnp.int32)
    ones_n = jnp.ones((n,), jnp.bfloat16)
    a = (jnp.zeros((n_pad, n_pad), jnp.bfloat16)
         .at[dst, src].add(ones_e)
         .at[node_ids, node_ids].add(ones_n))

    # Zero-padded bf16 node features (padded rows/cols contribute nothing).
    x_pad = jnp.zeros((n_pad, params["f_pad"]), jnp.bfloat16).at[:n, :f].set(
        x.astype(jnp.bfloat16))

    # global_add_pool matrix: pool[g, i] = 1 if batch[i] == g; padded nodes map to -1 (all-zero).
    batch_pad = jnp.full((n_pad,), -1, jnp.int32).at[:n].set(batch.astype(jnp.int32))
    pool = jax.nn.one_hot(batch_pad, g_pad, dtype=jnp.bfloat16).T     # (g_pad, n_pad)

    h = x_pad
    pooled_slices = []
    for lp in params["gin"]:
        h, pooled = gin_layer(a, h, pool, lp["w1"], lp["b1"], lp["w2"], lp["b2"])
        pooled_slices.append(pooled[:num_graphs, :hidden])
    y = jnp.concatenate(pooled_slices, axis=1)       # (num_graphs, hidden_dim * num_gc_layers)

    if params["proto_w"] is not None:
        # MultiPrototypes: all bias-free heads as one tiny fused matmul; a dedicated
        # pallas_call's launch/DMA setup would exceed its compute, so let XLA fuse it.
        out = jnp.dot(y, params["proto_w"], preferred_element_type=jnp.float32)
        proto_out = []
        off = 0
        for kp in params["proto_sizes"]:
            proto_out.append(out[:, off:off + kp])
            off += kp
        return y, proto_out
    return y


# ----------------------------- main -----------------------------

if __name__ == "__main__":
    key = jax.random.PRNGKey(0)

    # small, forward-consistent shapes
    num_nodes = 8
    num_features = 4
    hidden_dim = 32
    num_gc_layers = 3
    num_graphs = 2
    nmb_prototypes = [8, 16]                      # exercises MultiPrototypes

    key, kx = jax.random.split(key)
    x = jax.random.normal(kx, (num_nodes, num_features), jnp.float32)

    # two 4-node ring graphs, undirected (both directions listed)
    src = jnp.array([0, 1, 1, 2, 2, 3, 3, 0, 4, 5, 5, 6, 6, 7, 7, 4], jnp.int32)
    dst = jnp.array([1, 0, 2, 1, 3, 2, 0, 3, 5, 4, 6, 5, 7, 6, 4, 7], jnp.int32)
    edge_index = jnp.stack([src, dst], axis=0)    # (2, E)
    batch = jnp.array([0, 0, 0, 0, 1, 1, 1, 1], jnp.int32)

    params = init_simclr_params(key, num_features, hidden_dim, num_gc_layers, nmb_prototypes)

    y, proto_out = simclr_forward(params, x, edge_index, batch, num_graphs)
    jax.block_until_ready((y, proto_out))

    assert y.shape == (num_graphs, hidden_dim * num_gc_layers)
    assert [p.shape for p in proto_out] == [(num_graphs, k) for k in nmb_prototypes]
    print("KERNEL_OK")
</pallas_src>

<mosaic_0001>
module attributes {stable_mosaic.version = 11 : i64} {
  func.func @_gin_layer_kernel(%arg0: i32, %arg1: i32, %arg2: memref<256x512xbf16, #tpu.memory_space<vmem>>, %arg3: memref<512x128xbf16, #tpu.memory_space<vmem>>, %arg4: memref<128x128xbf16, #tpu.memory_space<vmem>>, %arg5: memref<1x128xf32, #tpu.memory_space<vmem>>, %arg6: memref<128x128xbf16, #tpu.memory_space<vmem>>, %arg7: memref<1x128xf32, #tpu.memory_space<vmem>>, %arg8: memref<16x256xbf16, #tpu.memory_space<vmem>>, %arg9: memref<256x128xbf16, #tpu.memory_space<vmem>>, %arg10: memref<1x16x128xf32, #tpu.memory_space<vmem>>, %arg11: memref<256x128xf32, #tpu.memory_space<vmem>>) attributes {dimension_semantics = [#tpu.dimension_semantics<parallel>, #tpu.dimension_semantics<arbitrary>], iteration_bounds = array<i64: 2, 1>, scalar_prefetch = 0 : i64, scratch_operands = 1 : i64, tpu.core_type = #tpu.core_type<tc>, window_params = [{transform_indices = @transform_0, window_bounds = array<i64: 256, 512>}, {transform_indices = @transform_1, window_bounds = array<i64: 512, 128>}, {pipeline_mode = #tpu.pipeline_mode<synchronous>, transform_indices = @transform_2, window_bounds = array<i64: 128, 128>}, {pipeline_mode = #tpu.pipeline_mode<synchronous>, transform_indices = @transform_3, window_bounds = array<i64: 1, 128>}, {pipeline_mode = #tpu.pipeline_mode<synchronous>, transform_indices = @transform_4, window_bounds = array<i64: 128, 128>}, {pipeline_mode = #tpu.pipeline_mode<synchronous>, transform_indices = @transform_5, window_bounds = array<i64: 1, 128>}, {transform_indices = @transform_6, window_bounds = array<i64: 16, 256>}, {transform_indices = @transform_7, window_bounds = array<i64: 256, 128>}, {transform_indices = @transform_8, window_bounds = array<i64: 1, 16, 128>}]} {
    %c0_i32 = arith.constant 0 : i32
    %0 = arith.cmpi eq, %arg1, %c0_i32 : i32
    %1 = arith.extui %0 : i1 to i32
    %c0_i32_0 = arith.constant 0 : i32
    %2 = arith.cmpi ne, %1, %c0_i32_0 : i32
    scf.if %2 {
      %cst_10 = arith.constant 0.000000e+00 : f32
      %12 = vector.broadcast %cst_10 : f32 to vector<256x128xf32>
      %c0_11 = arith.constant 0 : index
      %c0_12 = arith.constant 0 : index
      %13 = vector.load %arg11[%c0_11, %c0_12] : memref<256x128xf32, #tpu.memory_space<vmem>>, vector<256x128xf32>
      tpu.vector_store %arg11[%c0_11, %c0_12], %12 {strides = array<i32>} : memref<256x128xf32, #tpu.memory_space<vmem>>, vector<256x128xf32>,
    } else {
    }
    %c0 = arith.constant 0 : index
    %c0_1 = arith.constant 0 : index
    %3 = vector.load %arg11[%c0, %c0_1] : memref<256x128xf32, #tpu.memory_space<vmem>>, vector<256x128xf32>
    %c0_2 = arith.constant 0 : index
    %c0_3 = arith.constant 0 : index
    %4 = vector.load %arg2[%c0_2, %c0_3] : memref<256x512xbf16, #tpu.memory_space<vmem>>, vector<256x512xbf16>
    %c0_4 = arith.constant 0 : index
    %c0_5 = arith.constant 0 : index
    %5 = vector.load %arg3[%c0_4, %c0_5] : memref<512x128xbf16, #tpu.memory_space<vmem>>, vector<512x128xbf16>
    %cst = arith.constant dense<0.000000e+00> : vector<256x128xf32>
    %6 = tpu.matmul %4, %5, %cst {dimension_numbers = #tpu.dot_dimension_numbers<[1], [0], [0], [1], [0, 0, 1, 1], [], []>} : vector<256x512xbf16>, vector<512x128xbf16>, vector<256x128xf32> -> vector<256x128xf32>
    %7 = arith.addf %3, %6 : vector<256x128xf32>
    %c0_6 = arith.constant 0 : index
    %c0_7 = arith.constant 0 : index
    %8 = vector.load %arg11[%c0_6, %c0_7] : memref<256x128xf32, #tpu.memory_space<vmem>>, vector<256x128xf32>
    tpu.vector_store %arg11[%c0_6, %c0_7], %7 {strides = array<i32>} : memref<256x128xf32, #tpu.memory_space<vmem>>, vector<256x128xf32>,
    %c0_i32_8 = arith.constant 0 : i32
    %9 = arith.cmpi eq, %arg1, %c0_i32_8 : i32
    %10 = arith.extui %9 : i1 to i32
    %c0_i32_9 = arith.constant 0 : i32
    %11 = arith.cmpi ne, %10, %c0_i32_9 : i32
    scf.if %11 {
      %c0_10 = arith.constant 0 : index
      %c0_11 = arith.constant 0 : index
      %12 = vector.load %arg11[%c0_10, %c0_11] : memref<256x128xf32, #tpu.memory_space<vmem>>, vector<256x128xf32>
      %13 = arith.truncf %12 : vector<256x128xf32> to vector<256x128xbf16>
      %c0_12 = arith.constant 0 : index
      %c0_13 = arith.constant 0 : index
      %14 = vector.load %arg4[%c0_12, %c0_13] : memref<128x128xbf16, #tpu.memory_space<vmem>>, vector<128x128xbf16>
      %cst_14 = arith.constant dense<0.000000e+00> : vector<256x128xf32>
      %15 = tpu.matmul %13, %14, %cst_14 {dimension_numbers = #tpu.dot_dimension_numbers<[1], [0], [0], [1], [0, 0, 1, 1], [], []>} : vector<256x128xbf16>, vector<128x128xbf16>, vector<256x128xf32> -> vector<256x128xf32>
      %c0_15 = arith.constant 0 : index
      %c0_16 = arith.constant 0 : index
      %16 = vector.load %arg5[%c0_15, %c0_16] : memref<1x128xf32, #tpu.memory_space<vmem>>, vector<1x128xf32>
      %17 = vector.broadcast %16 : vector<1x128xf32> to vector<256x128xf32>
      %18 = arith.addf %15, %17 : vector<256x128xf32>
      %cst_17 = arith.constant 0.000000e+00 : f32
      %19 = vector.broadcast %cst_17 : f32 to vector<256x128xf32>
      %20 = arith.maximumf %18, %19 : vector<256x128xf32>
      %21 = arith.truncf %20 : vector<256x128xf32> to vector<256x128xbf16>
      %c0_18 = arith.constant 0 : index
      %c0_19 = arith.constant 0 : index
      %22 = vector.load %arg6[%c0_18, %c0_19] : memref<128x128xbf16, #tpu.memory_space<vmem>>, vector<128x128xbf16>
      %cst_20 = arith.constant dense<0.000000e+00> : vector<256x128xf32>
      %23 = tpu.matmul %21, %22, %cst_20 {dimension_numbers = #tpu.dot_dimension_numbers<[1], [0], [0], [1], [0, 0, 1, 1], [], []>} : vector<256x128xbf16>, vector<128x128xbf16>, vector<256x128xf32> -> vector<256x128xf32>
      %c0_21 = arith.constant 0 : index
      %c0_22 = arith.constant 0 : index
      %24 = vector.load %arg7[%c0_21, %c0_22] : memref<1x128xf32, #tpu.memory_space<vmem>>, vector<1x128xf32>
      %25 = vector.broadcast %24 : vector<1x128xf32> to vector<256x128xf32>
      %26 = arith.addf %23, %25 : vector<256x128xf32>
      %cst_23 = arith.constant 0.000000e+00 : f32
      %27 = vector.broadcast %cst_23 : f32 to vector<256x128xf32>
      %28 = arith.maximumf %26, %27 : vector<256x128xf32>
      %29 = arith.truncf %28 : vector<256x128xf32> to vector<256x128xbf16>
      %c0_24 = arith.constant 0 : index
      %c0_25 = arith.constant 0 : index
      %30 = vector.load %arg9[%c0_24, %c0_25] : memref<256x128xbf16, #tpu.memory_space<vmem>>, vector<256x128xbf16>
      tpu.vector_store %arg9[%c0_24, %c0_25], %29 {strides = array<i32>} : memref<256x128xbf16, #tpu.memory_space<vmem>>, vector<256x128xbf16>,
      %c0_26 = arith.constant 0 : index
      %c0_27 = arith.constant 0 : index
      %31 = vector.load %arg8[%c0_26, %c0_27] : memref<16x256xbf16, #tpu.memory_space<vmem>>, vector<16x256xbf16>
      %cst_28 = arith.constant dense<0.000000e+00> : vector<16x128xf32>
      %32 = tpu.matmul %31, %29, %cst_28 {dimension_numbers = #tpu.dot_dimension_numbers<[1], [0], [0], [1], [0, 0, 1, 1], [], []>} : vector<16x256xbf16>, vector<256x128xbf16>, vector<16x128xf32> -> vector<16x128xf32>
      %c0_29 = arith.constant 0 : index
      %c0_30 = arith.constant 0 : index
      %c0_31 = arith.constant 0 : index
      %33 = vector.load %arg10[%c0_29, %c0_30, %c0_31] : memref<1x16x128xf32, #tpu.memory_space<vmem>>, vector<1x16x128xf32>
      %34 = vector.shape_cast %33 : vector<1x16x128xf32> to vector<16x128xf32>
      %35 = vector.shape_cast %32 : vector<16x128xf32> to vector<1x16x128xf32>
      tpu.vector_store %arg10[%c0_29, %c0_30, %c0_31], %35 {strides = array<i32>} : memref<1x16x128xf32, #tpu.memory_space<vmem>>, vector<1x16x128xf32>,
    } else {
    }
    return
  }
  func.func @transform_0(%arg0: i32, %arg1: i32) -> (i32, i32) {
    %c0_i32 = arith.constant 0 : i32
    return %arg0, %arg1 : i32, i32
  }
  func.func @transform_1(%arg0: i32, %arg1: i32) -> (i32, i32) {
    %c0_i32 = arith.constant 0 : i32
    %c0_i32_0 = arith.constant 0 : i32
    return %arg1, %c0_i32 : i32, i32
  }
  func.func @transform_2(%arg0: i32, %arg1: i32) -> (i32, i32) {
    %c0_i32 = arith.constant 0 : i32
    %c0_i32_0 = arith.constant 0 : i32
    %c0_i32_1 = arith.constant 0 : i32
    return %c0_i32, %c0_i32_0 : i32, i32
  }
  func.func @transform_3(%arg0: i32, %arg1: i32) -> (i32, i32) {
    %c0_i32 = arith.constant 0 : i32
    %c0_i32_0 = arith.constant 0 : i32
    %c0_i32_1 = arith.constant 0 : i32
    return %c0_i32, %c0_i32_0 : i32, i32
  }
  func.func @transform_4(%arg0: i32, %arg1: i32) -> (i32, i32) {
    %c0_i32 = arith.constant 0 : i32
    %c0_i32_0 = arith.constant 0 : i32
    %c0_i32_1 = arith.constant 0 : i32
    return %c0_i32, %c0_i32_0 : i32, i32
  }
  func.func @transform_5(%arg0: i32, %arg1: i32) -> (i32, i32) {
    %c0_i32 = arith.constant 0 : i32
    %c0_i32_0 = arith.constant 0 : i32
    %c0_i32_1 = arith.constant 0 : i32
    return %c0_i32, %c0_i32_0 : i32, i32
  }
  func.func @transform_6(%arg0: i32, %arg1: i32) -> (i32, i32) {
    %c0_i32 = arith.constant 0 : i32
    %c0_i32_0 = arith.constant 0 : i32
    return %c0_i32, %arg0 : i32, i32
  }
  func.func @transform_7(%arg0: i32, %arg1: i32) -> (i32, i32) {
    %c0_i32 = arith.constant 0 : i32
    %c0_i32_0 = arith.constant 0 : i32
    return %arg0, %c0_i32 : i32, i32
  }
  func.func @transform_8(%arg0: i32, %arg1: i32) -> (i32, i32, i32) {
    %c0_i32 = arith.constant 0 : i32
    %c0_i32_0 = arith.constant 0 : i32
    %c0_i32_1 = arith.constant 0 : i32
    return %arg0, %c0_i32, %c0_i32_0 : i32, i32, i32
  }
}

</mosaic_0001>

<llo_original>
// kernel: tpu_custom_call.1
$region0: #{tpu_custom_call.1}
  #allocation0 [shape = 'u32[]', space=smem, size = 0x4, offset = 0x4, fixed_abs, tag = 'smem constant byte address 0x4 - core index']
  #allocation1 [shape = 'u32[144,128]{1,0:T(1,128)}', space=vmem, size = 0x12000, scoped, tag = 'internal scratch']
  #allocation2 [shape = 'f32[256,128]{1,0:T(8,128)}', space=vmem, size = 0x20000, scoped, tag = 'scratch operand']
  %s0 = inlined_call_operand.hbm [shape: bf16[512,512], index: 0, kind: input, shape index: {}]
  %s1 = inlined_call_operand.hbm [shape: bf16[512,128], index: 1, kind: input, shape index: {}]
  %s2 = inlined_call_operand.hbm [shape: bf16[128,128], index: 2, kind: input, shape index: {}]
  %s3 = inlined_call_operand.vmem [shape: f32[1,128], index: 3, kind: input, shape index: {}]
  %s4 = inlined_call_operand.hbm [shape: bf16[128,128], index: 4, kind: input, shape index: {}]
  %s5 = inlined_call_operand.vmem [shape: f32[1,128], index: 5, kind: input, shape index: {}]
  %s6 = inlined_call_operand.hbm [shape: bf16[16,512], index: 6, kind: input, shape index: {}]
  %s7 = inlined_call_operand.hbm [shape: bf16[512,128], index: 7, kind: output, shape index: {0}]
  %s8 = inlined_call_operand.hbm [shape: f32[2,16,128], index: 8, kind: output, shape index: {1}]
  %9 = xla_tuple %s7, %s8
  %s10 = sld [smem:[#allocation0]]
  $region97: #{tpu_custom_call.1} parent=0
    _
  %s12 = ssub.s32 1, %s10
  %s13 = scalar_select 0, %s12, %s10
  $region1: #{tpu_custom_call.1} parent=0
    #allocation3 [shape = 'u8[524288]{0}', space=vmem, size = 0x80000, scoped, tag = 'input window, operand 0']
    #allocation4 [shape = 's32[2]{0}', space=sflag, size = 0x8, scoped, tag = 'scoped memory for tpu_custom_call.1']
    #allocation5 [shape = 's32[2]{0}', space=sflag, size = 0x8, scoped, tag = 'scoped memory for tpu_custom_call.1']
    #allocation6 [shape = 'u8[131072]{0}', space=vmem, size = 0x20000, scoped, tag = 'input window, operand 1, single buffered']
    #allocation7 [shape = 's32[1]{0}', space=sflag, size = 0x4, scoped, tag = 'scoped memory for tpu_custom_call.1']
    #allocation8 [shape = 'u8[32768]{0}', space=vmem, size = 0x8000, scoped, tag = 'input window, operand 2, single buffered']
    #allocation9 [shape = 'u8[32768]{0}', space=vmem, size = 0x8000, scoped, tag = 'input window, operand 4, single buffered']
    #allocation10 [shape = 's32[1]{0}', space=sflag, size = 0x4, scoped, tag = 'scoped memory for tpu_custom_call.1']
    #allocation11 [shape = 'u8[16384]{0}', space=vmem, size = 0x4000, scoped, tag = 'input window, operand 6']
    #allocation12 [shape = 'u8[131072]{0}', space=vmem, size = 0x20000, scoped, tag = 'output window, operand 0']
    #allocation13 [shape = 'u8[16384]{0}', space=vmem, size = 0x4000, scoped, tag = 'output window, operand 1']
    #allocation14 [shape = 's32[2]{0}', space=sflag, size = 0x8, scoped, tag = 'scoped memory for tpu_custom_call.1']
    %14 = vsyncpa [#allocation4], 0
    %s15 = scalar_lea.sflag [#allocation4], 1
    %16 = vsyncpa %s15, 0
    %17 = vsyncpa [#allocation7], 0
    %18 = vsyncpa [#allocation10], 0
    %19 = vsyncpa [#allocation5], 0
    %s20 = scalar_lea.sflag [#allocation5], 1
    %21 = vsyncpa %s20, 0
    %22 = vsyncpa [#allocation14], 0
    %s23 = scalar_lea.sflag [#allocation14], 1
    %24 = vsyncpa %s23, 0
    loop: start=0, step=1, limit=4
    $region2: #{tpu_custom_call.1} parent=1 // loop_pre_header
      _
    $region3: #{tpu_custom_call.1} parent=1 // loop_header
      %s26 = sphi 0, %s30
      %p27 = scmp.ge.s32.totalorder %s26, 4
      %s33 = sphi 0, %s45
      %s34 = sphi 0, %s41
      %s35 = sphi 0, %s33
      %s36 = sphi 0, %s34
      %s37 = sphi 0, %s35
      %s38 = sphi 0, %s36
      %s50 = sphi 0, %s52
      %s53 = sphi 0, %s50
      %s54 = sphi 0, %s53
      %s70 = sphi 0, %s54
      %s76 = sphi 0, %s78
      %s79 = sphi 0, %s76
      %s80 = sphi 0, %s79
      %s96 = sphi 0, %s80
      %s100 = sphi 0, %s100
      %s102 = sphi 0, %s100
      %s103 = sphi 0, %s102
      %s117 = sphi 0, %s103
      %s121 = sphi 0, %s121
      %s123 = sphi 0, %s121
      %s124 = sphi 0, %s123
      %s138 = sphi 0, %s124
      %s142 = sphi 0, %s142
      %s144 = sphi 0, %s142
      %s145 = sphi 0, %s144
      %s159 = sphi 0, %s145
      %s163 = sphi 0, %s163
      %s165 = sphi 0, %s163
      %s166 = sphi 0, %s165
      %s180 = sphi 0, %s166
      %s186 = sphi 0, %s188
      %s189 = sphi 0, %s186
      %s190 = sphi 0, %s189
      %s206 = sphi 0, %s190
      %s212 = sphi 0, %s214
      %s215 = sphi 0, %s212
      %s216 = sphi 0, %s215
      %s232 = sphi 0, %s216
      %s238 = sphi 0, %s240
      %s241 = sphi 0, %s238
      %s242 = sphi 0, %s241
      %s258 = sphi 0, %s242
    $region4: #{tpu_custom_call.1} parent=1 // loop_header_branch
      %29 = sbr.rel (%p27) target = $region8
    $region5: #{tpu_custom_call.1} parent=1 // loop_body
      %s31 = ssub.s32 %s26, 1
      %s32 = ssub.s32 %s26, 2
      %s39 = sadd.s32 1, %s34
      %p40 = scmp.ge.s32.totalorder %s39, 1
      %s41 = scalar_select %p40, 0, %s39
      %s42 = sadd.s32 1, %s33
      %s43 = scalar_select %p40, %s42, %s33
      %p44 = scmp.ge.s32.totalorder %s43, 2
      %s45 = scalar_select %p44, 0, %s43
      %s46 = ssub.s32 %s33, %s45
      %s47 = ssub.s32 %s34, %s41
      %s48 = sor.u32 %s46, %s47
      %p49 = scmp.eq.s32.totalorder %s48, 0
      %s51 = sadd.s32 %s50, 1
      %s52 = scalar_select %p49, %s50, %s51
      %p55 = pneg %p49
      %p56 = scmp.eq.s32.totalorder %s26, 1
      %p57 = por %p55, %p56
      %p58 = scmp.ne.s32.totalorder %s50, %s53
      %p59 = scmp.eq.s32.totalorder %s26, 0
      %p60 = por %p58, %p59
      %p61 = scmp.ne.s32.totalorder %s50, %s53
      %p62 = scmp.eq.s32.totalorder %s31, 1
      %p63 = por %p61, %p62
      %p64 = scmp.ne.s32.totalorder %s53, %s54
      %p65 = scmp.eq.s32.totalorder %s31, 0
      %p66 = por %p64, %p65
      %p67 = scmp.ne.s32.totalorder %s53, %s54
      %p68 = scmp.eq.s32.totalorder %s32, 1
      %p69 = por %p67, %p68
      %p71 = scmp.ne.s32.totalorder %s54, %s70
      %p72 = scmp.eq.s32.totalorder %s32, 0
      %p73 = por %p71, %p72
      %s74 = ssub.s32 %s34, %s41
      %p75 = scmp.eq.s32.totalorder %s74, 0
      %s77 = sadd.s32 %s76, 1
      %s78 = scalar_select %p75, %s76, %s77
      %p81 = pneg %p75
      %p82 = scmp.eq.s32.totalorder %s26, 1
      %p83 = por %p81, %p82
      %p84 = scmp.ne.s32.totalorder %s76, %s79
      %p85 = scmp.eq.s32.totalorder %s26, 0
      %p86 = por %p84, %p85
      %p87 = scmp.ne.s32.totalorder %s76, %s79
      %p88 = scmp.eq.s32.totalorder %s31, 1
      %p89 = por %p87, %p88
      %p90 = scmp.ne.s32.totalorder %s79, %s80
      %p91 = scmp.eq.s32.totalorder %s31, 0
      %p92 = por %p90, %p91
      %p93 = scmp.ne.s32.totalorder %s79, %s80
      %p94 = scmp.eq.s32.totalorder %s32, 1
      %p95 = por %p93, %p94
      %p97 = scmp.ne.s32.totalorder %s80, %s96
      %p98 = scmp.eq.s32.totalorder %s32, 0
      %p99 = por %p97, %p98
      %s101 = sadd.s32 %s100, 1
      %p104 = scmp.eq.s32.totalorder %s26, 1
      %p105 = scmp.ne.s32.totalorder %s100, %s102
      %p106 = scmp.eq.s32.totalorder %s26, 0
      %p107 = por %p105, %p106
      %p108 = scmp.ne.s32.totalorder %s100, %s102
      %p109 = scmp.eq.s32.totalorder %s31, 1
      %p110 = por %p108, %p109
      %p111 = scmp.ne.s32.totalorder %s102, %s103
      %p112 = scmp.eq.s32.totalorder %s31, 0
      %p113 = por %p111, %p112
      %p114 = scmp.ne.s32.totalorder %s102, %s103
      %p115 = scmp.eq.s32.totalorder %s32, 1
      %p116 = por %p114, %p115
      %p118 = scmp.ne.s32.totalorder %s103, %s117
      %p119 = scmp.eq.s32.totalorder %s32, 0
      %p120 = por %p118, %p119
      %s122 = sadd.s32 %s121, 1
      %p125 = scmp.eq.s32.totalorder %s26, 1
      %p126 = scmp.ne.s32.totalorder %s121, %s123
      %p127 = scmp.eq.s32.totalorder %s26, 0
      %p128 = por %p126, %p127
      %p129 = scmp.ne.s32.totalorder %s121, %s123
      %p130 = scmp.eq.s32.totalorder %s31, 1
      %p131 = por %p129, %p130
      %p132 = scmp.ne.s32.totalorder %s123, %s124
      %p133 = scmp.eq.s32.totalorder %s31, 0
      %p134 = por %p132, %p133
      %p135 = scmp.ne.s32.totalorder %s123, %s124
      %p136 = scmp.eq.s32.totalorder %s32, 1
      %p137 = por %p135, %p136
      %p139 = scmp.ne.s32.totalorder %s124, %s138
      %p140 = scmp.eq.s32.totalorder %s32, 0
      %p141 = por %p139, %p140
      %s143 = sadd.s32 %s142, 1
      %p146 = scmp.eq.s32.totalorder %s26, 1
      %p147 = scmp.ne.s32.totalorder %s142, %s144
      %p148 = scmp.eq.s32.totalorder %s26, 0
      %p149 = por %p147, %p148
      %p150 = scmp.ne.s32.totalorder %s142, %s144
      %p151 = scmp.eq.s32.totalorder %s31, 1
      %p152 = por %p150, %p151
      %p153 = scmp.ne.s32.totalorder %s144, %s145
      %p154 = scmp.eq.s32.totalorder %s31, 0
      %p155 = por %p153, %p154
      %p156 = scmp.ne.s32.totalorder %s144, %s145
      %p157 = scmp.eq.s32.totalorder %s32, 1
      %p158 = por %p156, %p157
      %p160 = scmp.ne.s32.totalorder %s145, %s159
      %p161 = scmp.eq.s32.totalorder %s32, 0
      %p162 = por %p160, %p161
      %s164 = sadd.s32 %s163, 1
      %p167 = scmp.eq.s32.totalorder %s26, 1
      %p168 = scmp.ne.s32.totalorder %s163, %s165
      %p169 = scmp.eq.s32.totalorder %s26, 0
      %p170 = por %p168, %p169
      %p171 = scmp.ne.s32.totalorder %s163, %s165
      %p172 = scmp.eq.s32.totalorder %s31, 1
      %p173 = por %p171, %p172
      %p174 = scmp.ne.s32.totalorder %s165, %s166
      %p175 = scmp.eq.s32.totalorder %s31, 0
      %p176 = por %p174, %p175
      %p177 = scmp.ne.s32.totalorder %s165, %s166
      %p178 = scmp.eq.s32.totalorder %s32, 1
      %p179 = por %p177, %p178
      %p181 = scmp.ne.s32.totalorder %s166, %s180
      %p182 = scmp.eq.s32.totalorder %s32, 0
      %p183 = por %p181, %p182
      %s184 = ssub.s32 %s33, %s45
      %p185 = scmp.eq.s32.totalorder %s184, 0
      %s187 = sadd.s32 %s186, 1
      %s188 = scalar_select %p185, %s186, %s187
      %p191 = pneg %p185
      %p192 = scmp.eq.s32.totalorder %s26, 1
      %p193 = por %p191, %p192
      %p194 = scmp.ne.s32.totalorder %s186, %s189
      %p195 = scmp.eq.s32.totalorder %s26, 0
      %p196 = por %p194, %p195
      %p197 = scmp.ne.s32.totalorder %s186, %s189
      %p198 = scmp.eq.s32.totalorder %s31, 1
      %p199 = por %p197, %p198
      %p200 = scmp.ne.s32.totalorder %s189, %s190
      %p201 = scmp.eq.s32.totalorder %s31, 0
      %p202 = por %p200, %p201
      %p203 = scmp.ne.s32.totalorder %s189, %s190
      %p204 = scmp.eq.s32.totalorder %s32, 1
      %p205 = por %p203, %p204
      %p207 = scmp.ne.s32.totalorder %s190, %s206
      %p208 = scmp.eq.s32.totalorder %s32, 0
      %p209 = por %p207, %p208
      %s210 = ssub.s32 %s33, %s45
      %p211 = scmp.eq.s32.totalorder %s210, 0
      %s213 = sadd.s32 %s212, 1
      %s214 = scalar_select %p211, %s212, %s213
      %p217 = pneg %p211
      %p218 = scmp.eq.s32.totalorder %s26, 1
      %p219 = por %p217, %p218
      %p220 = scmp.ne.s32.totalorder %s212, %s215
      %p221 = scmp.eq.s32.totalorder %s26, 0
      %p222 = por %p220, %p221
      %p223 = scmp.ne.s32.totalorder %s212, %s215
      %p224 = scmp.eq.s32.totalorder %s31, 1
      %p225 = por %p223, %p224
      %p226 = scmp.ne.s32.totalorder %s215, %s216
      %p227 = scmp.eq.s32.totalorder %s31, 0
      %p228 = por %p226, %p227
      %p229 = scmp.ne.s32.totalorder %s215, %s216
      %p230 = scmp.eq.s32.totalorder %s32, 1
      %p231 = por %p229, %p230
      %p233 = scmp.ne.s32.totalorder %s216, %s232
      %p234 = scmp.eq.s32.totalorder %s32, 0
      %p235 = por %p233, %p234
      %s236 = ssub.s32 %s33, %s45
      %p237 = scmp.eq.s32.totalorder %s236, 0
      %s239 = sadd.s32 %s238, 1
      %s240 = scalar_select %p237, %s238, %s239
      %p243 = pneg %p237
      %p244 = scmp.eq.s32.totalorder %s26, 1
      %p245 = por %p243, %p244
      %p246 = scmp.ne.s32.totalorder %s238, %s241
      %p247 = scmp.eq.s32.totalorder %s26, 0
      %p248 = por %p246, %p247
      %p249 = scmp.ne.s32.totalorder %s238, %s241
      %p250 = scmp.eq.s32.totalorder %s31, 1
      %p251 = por %p249, %p250
      %p252 = scmp.ne.s32.totalorder %s241, %s242
      %p253 = scmp.eq.s32.totalorder %s31, 0
      %p254 = por %p252, %p253
      %p255 = scmp.ne.s32.totalorder %s241, %s242
      %p256 = scmp.eq.s32.totalorder %s32, 1
      %p257 = por %p255, %p256
      %p259 = scmp.ne.s32.totalorder %s242, %s258
      %p260 = scmp.eq.s32.totalorder %s32, 0
      %p261 = por %p259, %p260
      %p262 = scmp.le.s32.totalorder 1, %s26
      %p263 = scmp.lt.s32.totalorder %s26, 3
      %p264 = pnand %p262, %p263
      %p265 = pneg %p264
      // Predicated region
      $region9: #{tpu_custom_call.1} parent=5 // pred_check
        _
      $region10: #{tpu_custom_call.1} parent=5 // pred_check_branch
        %267 = sbr.rel (%p264) target = $region12
      $region11: #{tpu_custom_call.1} parent=5 // pred_region
        %s268 = ssub.s32 %s26, 1
        // Predicated region
        $region13: #{tpu_custom_call.1} parent=11 // pred_check
          %p269 = pneg %p92
        $region14: #{tpu_custom_call.1} parent=11 // pred_check_branch
          %271 = sbr.rel (%p269) target = $region16
        $region15: #{tpu_custom_call.1} parent=11 // pred_region
          %s272 = smul.u32 64, %s36
          %s274 = ssub.s32 4096, 4096
          %275 = vsyncadd [#allocation7], %s274
          %s276 = smul.addr %s272, 64
          %s277 = scalar_lea.hbm %s1, %s276
          %s278 = sshll.u32 [#allocation6], 4
          %s279 = int_to_ptr.vmem [resolvable:$true] %s278
          %284 = dma.hbm_to_vmem [thread:$0]  %s277, 4096, %s279, [#allocation7], 64, 64, 4
        $region16: #{tpu_custom_call.1} parent=11 // pred_fallthru
          _
        // Predicated region
        $region17: #{tpu_custom_call.1} parent=11 // pred_check
          %p285 = pneg %p113
        $region18: #{tpu_custom_call.1} parent=11 // pred_check_branch
          %287 = sbr.rel (%p285) target = $region20
        $region19: #{tpu_custom_call.1} parent=11 // pred_region
          %s289 = ssub.s32 1024, 1024
          %290 = vsyncadd [#allocation7], %s289
          %s291 = sshll.u32 [#allocation8], 4
          %s292 = int_to_ptr.vmem [resolvable:$true] %s291
          %297 = dma.hbm_to_vmem [thread:$0]  %s2, 1024, %s292, [#allocation7], 64, 64, 4
        $region20: #{tpu_custom_call.1} parent=11 // pred_fallthru
          _
        // Predicated region
        $region21: #{tpu_custom_call.1} parent=11 // pred_check
          %p298 = pneg %p134
        $region22: #{tpu_custom_call.1} parent=11 // pred_check_branch
          %300 = sbr.rel (%p298) target = $region24
        $region23: #{tpu_custom_call.1} parent=11 // pred_region
          _
        $region24: #{tpu_custom_call.1} parent=11 // pred_fallthru
          _
        // Predicated region
        $region25: #{tpu_custom_call.1} parent=11 // pred_check
          %p301 = pneg %p155
        $region26: #{tpu_custom_call.1} parent=11 // pred_check_branch
          %303 = sbr.rel (%p301) target = $region28
        $region27: #{tpu_custom_call.1} parent=11 // pred_region
          %s305 = ssub.s32 1024, 1024
          %306 = vsyncadd [#allocation10], %s305
          %s307 = sshll.u32 [#allocation9], 4
          %s308 = int_to_ptr.vmem [resolvable:$true] %s307
          %313 = dma.hbm_to_vmem [thread:$0]  %s4, 1024, %s308, [#allocation10], 64, 64, 4
        $region28: #{tpu_custom_call.1} parent=11 // pred_fallthru
          _
        // Predicated region
        $region29: #{tpu_custom_call.1} parent=11 // pred_check
          %p314 = pneg %p176
        $region30: #{tpu_custom_call.1} parent=11 // pred_check_branch
          %316 = sbr.rel (%p314) target = $region32
        $region31: #{tpu_custom_call.1} parent=11 // pred_region
          _
        $region32: #{tpu_custom_call.1} parent=11 // pred_fallthru
          _
      $region12: #{tpu_custom_call.1} parent=5 // pred_fallthru
        _
      %p317 = scmp.lt.s32.totalorder %s26, 2
      // Predicated region
      $region33: #{tpu_custom_call.1} parent=5 // pred_check
        %p318 = pneg %p317
      $region34: #{tpu_custom_call.1} parent=5 // pred_check_branch
        %320 = sbr.rel (%p318) target = $region36
      $region35: #{tpu_custom_call.1} parent=5 // pred_region
        // Predicated region
        $region37: #{tpu_custom_call.1} parent=35 // pred_check
          %p321 = pneg %p60
        $region38: #{tpu_custom_call.1} parent=35 // pred_check_branch
          %323 = sbr.rel (%p321) target = $region40
        $region39: #{tpu_custom_call.1} parent=35 // pred_region
          %s324 = sand.u32 %s26, 1
          %s325 = scalar_lea.sflag [#allocation4], %s324
          %s326 = sand.u32 %s50, 1
          %s327 = smul.addr %s326, 512
          %s328 = scalar_lea.vmem [#allocation3], %s327
          %s329 = smul.u32 32, %s33
          %s330 = smul.u32 4, %s34
          %s332 = ssub.s32 8192, 8192
          %333 = vsyncadd %s325, %s332
          %s334 = smul.addr %s329, 4
          %s335 = sadd.s32 %s330, %s334
          %s336 = smul.addr %s335, 64
          %s337 = scalar_lea.hbm %s0, %s336
          %s338 = sshll.u32 %s328, 4
          %s339 = int_to_ptr.vmem [resolvable:$true] %s338
          %344 = dma.hbm_to_vmem [thread:$0]  %s337, 8192, %s339, %s325, 256, 256, 16
        $region40: #{tpu_custom_call.1} parent=35 // pred_fallthru
          _
        // Predicated region
        $region41: #{tpu_custom_call.1} parent=35 // pred_check
          %p345 = pneg %p196
        $region42: #{tpu_custom_call.1} parent=35 // pred_check_branch
          %347 = sbr.rel (%p345) target = $region44
        $region43: #{tpu_custom_call.1} parent=35 // pred_region
          %s348 = sand.u32 %s26, 1
          %s349 = scalar_lea.sflag [#allocation4], %s348
          %s350 = sand.u32 %s186, 1
          %s351 = smul.addr %s350, 16
          %s352 = scalar_lea.vmem [#allocation11], %s351
          %s353 = smul.u32 2, %s33
          %s355 = ssub.s32 256, 256
          %356 = vsyncadd %s349, %s355
          %s357 = smul.addr %s353, 64
          %s358 = scalar_lea.hbm %s6, %s357
          %s359 = sshll.u32 %s352, 4
          %s360 = int_to_ptr.vmem [resolvable:$true] %s359
          %365 = dma.hbm_to_vmem [thread:$0]  %s358, 256, %s360, %s349, 256, 128, 8
        $region44: #{tpu_custom_call.1} parent=35 // pred_fallthru
          _
      $region36: #{tpu_custom_call.1} parent=5 // pred_fallthru
        _
      %p366 = scmp.le.s32.totalorder 1, %s26
      %p367 = scmp.lt.s32.totalorder %s26, 3
      %p368 = pnand %p366, %p367
      %p369 = pneg %p368
      // Predicated region
      $region45: #{tpu_custom_call.1} parent=5 // pred_check
        _
      $region46: #{tpu_custom_call.1} parent=5 // pred_check_branch
        %371 = sbr.rel (%p368) target = $region48
      $region47: #{tpu_custom_call.1} parent=5 // pred_region
        %s372 = ssub.s32 %s26, 1
        %s373 = sand.u32 %s31, 1
        %s374 = scalar_lea.sflag [#allocation4], %s373
        %s375 = sand.u32 %s53, 1
        %s376 = smul.addr %s375, 512
        %s377 = scalar_lea.vmem [#allocation3], %s376
        // Predicated region
        $region49: #{tpu_custom_call.1} parent=47 // pred_check
          %p378 = pneg %p66
        $region50: #{tpu_custom_call.1} parent=47 // pred_check_branch
          %380 = sbr.rel (%p378) target = $region52
        $region51: #{tpu_custom_call.1} parent=47 // pred_region
          %381 = dma.done %s374, 8192
        $region52: #{tpu_custom_call.1} parent=47 // pred_fallthru
          _
        // Predicated region
        $region53: #{tpu_custom_call.1} parent=47 // pred_check
          %p382 = pneg %p92
        $region54: #{tpu_custom_call.1} parent=47 // pred_check_branch
          %384 = sbr.rel (%p382) target = $region56
        $region55: #{tpu_custom_call.1} parent=47 // pred_region
          %385 = dma.done [#allocation7], 4096
        $region56: #{tpu_custom_call.1} parent=47 // pred_fallthru
          _
        // Predicated region
        $region57: #{tpu_custom_call.1} parent=47 // pred_check
          %p386 = pneg %p113
        $region58: #{tpu_custom_call.1} parent=47 // pred_check_branch
          %388 = sbr.rel (%p386) target = $region60
        $region59: #{tpu_custom_call.1} parent=47 // pred_region
          %389 = dma.done [#allocation7], 1024
        $region60: #{tpu_custom_call.1} parent=47 // pred_fallthru
          _
        // Predicated region
        $region61: #{tpu_custom_call.1} parent=47 // pred_check
          %p390 = pneg %p155
        $region62: #{tpu_custom_call.1} parent=47 // pred_check_branch
          %392 = sbr.rel (%p390) target = $region64
        $region63: #{tpu_custom_call.1} parent=47 // pred_region
          %393 = dma.done [#allocation10], 1024
        $region64: #{tpu_custom_call.1} parent=47 // pred_fallthru
          _
        %s394 = sand.u32 %s31, 1
        %s395 = scalar_lea.sflag [#allocation4], %s394
        %s396 = sand.u32 %s189, 1
        %s397 = smul.addr %s396, 16
        %s398 = scalar_lea.vmem [#allocation11], %s397
        // Predicated region
        $region65: #{tpu_custom_call.1} parent=47 // pred_check
          %p399 = pneg %p202
        $region66: #{tpu_custom_call.1} parent=47 // pred_check_branch
          %401 = sbr.rel (%p399) target = $region68
        $region67: #{tpu_custom_call.1} parent=47 // pred_region
          %402 = dma.done %s395, 256
        $region68: #{tpu_custom_call.1} parent=47 // pred_fallthru
          _
        %s403 = sand.u32 %s31, 1
        %s404 = scalar_lea.sflag [#allocation4], %s403
        %s405 = sand.u32 %s53, 1
        %s406 = smul.addr %s405, 512
        %s407 = scalar_lea.vmem [#allocation3], %s406
        %p408 = pneg %p66
        %p409 = pneg %p63
        %p410 = pneg %p92
        %p411 = pneg %p89
        %p412 = pneg %p113
        %p413 = pneg %p110
        %p414 = pneg %p134
        %p415 = pneg %p131
        %p416 = pneg %p155
        %p417 = pneg %p152
        %p418 = pneg %p176
        %p419 = pneg %p173
        %s420 = sand.u32 %s31, 1
        %s421 = scalar_lea.sflag [#allocation4], %s420
        %s422 = sand.u32 %s189, 1
        %s423 = smul.addr %s422, 16
        %s424 = scalar_lea.vmem [#allocation11], %s423
        %p425 = pneg %p202
        %p426 = pneg %p199
        %p427 = pneg %p228
        %p428 = pneg %p225
        %s429 = sand.u32 %s215, 1
        %s430 = scalar_lea.sflag [#allocation5], %s429
        %s431 = sand.u32 %s215, 1
        %s432 = smul.addr %s431, 128
        %s433 = scalar_lea.vmem [#allocation12], %s432
        %p434 = pneg %p254
        %p435 = pneg %p251
        %s436 = sand.u32 %s241, 1
        %s437 = scalar_lea.sflag [#allocation14], %s436
        %s438 = sand.u32 %s241, 1
        %s439 = smul.addr %s438, 16
        %s440 = scalar_lea.vmem [#allocation13], %s439
        %s441 = smul.u32 32, %s35
        %s442 = smul.u32 4, %s36
        %s443 = smul.u32 64, %s36
        %s444 = smul.u32 2, %s35
        %s445 = smul.u32 32, %s35
        %p447 = scmp.eq.s32.totalorder %s36, 0
        // Predicated region
        $region69: #{tpu_custom_call.1} parent=47 // pred_check
          %p448 = pneg %p447
        $region70: #{tpu_custom_call.1} parent=47 // pred_check_branch
          %450 = sbr.rel (%p448) target = $region72
        $region71: #{tpu_custom_call.1} parent=47 // pred_region
          %451 = vst [vmem:[#allocation2] sm:$0xff] 0.0
          %452 = vst [vmem:[#allocation2 + $0x8] sm:$0xff] 0.0
          %453 = vst [vmem:[#allocation2 + $0x10] sm:$0xff] 0.0
          %454 = vst [vmem:[#allocation2 + $0x18] sm:$0xff] 0.0
          %455 = vst [vmem:[#allocation2 + $0x20] sm:$0xff] 0.0
          %456 = vst [vmem:[#allocation2 + $0x28] sm:$0xff] 0.0
          %457 = vst [vmem:[#allocation2 + $0x30] sm:$0xff] 0.0
          %458 = vst [vmem:[#allocation2 + $0x38] sm:$0xff] 0.0
          %459 = vst [vmem:[#allocation2 + $0x40] sm:$0xff] 0.0
          %460 = vst [vmem:[#allocation2 + $0x48] sm:$0xff] 0.0
          %461 = vst [vmem:[#allocation2 + $0x50] sm:$0xff] 0.0
          %462 = vst [vmem:[#allocation2 + $0x58] sm:$0xff] 0.0
          %463 = vst [vmem:[#allocation2 + $0x60] sm:$0xff] 0.0
          %464 = vst [vmem:[#allocation2 + $0x68] sm:$0xff] 0.0
          %465 = vst [vmem:[#allocation2 + $0x70] sm:$0xff] 0.0
          %466 = vst [vmem:[#allocation2 + $0x78] sm:$0xff] 0.0
          %467 = vst [vmem:[#allocation2 + $0x80] sm:$0xff] 0.0
          %468 = vst [vmem:[#allocation2 + $0x88] sm:$0xff] 0.0
          %469 = vst [vmem:[#allocation2 + $0x90] sm:$0xff] 0.0
          %470 = vst [vmem:[#allocation2 + $0x98] sm:$0xff] 0.0
          %471 = vst [vmem:[#allocation2 + $0xa0] sm:$0xff] 0.0
          %472 = vst [vmem:[#allocation2 + $0xa8] sm:$0xff] 0.0
          %473 = vst [vmem:[#allocation2 + $0xb0] sm:$0xff] 0.0
          %474 = vst [vmem:[#allocation2 + $0xb8] sm:$0xff] 0.0
          %475 = vst [vmem:[#allocation2 + $0xc0] sm:$0xff] 0.0
          %476 = vst [vmem:[#allocation2 + $0xc8] sm:$0xff] 0.0
          %477 = vst [vmem:[#allocation2 + $0xd0] sm:$0xff] 0.0
          %478 = vst [vmem:[#allocation2 + $0xd8] sm:$0xff] 0.0
          %479 = vst [vmem:[#allocation2 + $0xe0] sm:$0xff] 0.0
          %480 = vst [vmem:[#allocation2 + $0xe8] sm:$0xff] 0.0
          %481 = vst [vmem:[#allocation2 + $0xf0] sm:$0xff] 0.0
          %482 = vst [vmem:[#allocation2 + $0xf8] sm:$0xff] 0.0
        $region72: #{tpu_custom_call.1} parent=47 // pred_fallthru
          _
        %v483 = vld [vmem:[#allocation2] sm:$0xff]
        %v484 = vld [vmem:[#allocation2 + $0x8] sm:$0xff]
        %v485 = vld [vmem:[#allocation2 + $0x10] sm:$0xff]
        %v486 = vld [vmem:[#allocation2 + $0x18] sm:$0xff]
        %v487 = vld [vmem:[#allocation2 + $0x20] sm:$0xff]
        %v488 = vld [vmem:[#allocation2 + $0x28] sm:$0xff]
        %v489 = vld [vmem:[#allocation2 + $0x30] sm:$0xff]
        %v490 = vld [vmem:[#allocation2 + $0x38] sm:$0xff]
        %v491 = vld [vmem:[#allocation2 + $0x40] sm:$0xff]
        %v492 = vld [vmem:[#allocation2 + $0x48] sm:$0xff]
        %v493 = vld [vmem:[#allocation2 + $0x50] sm:$0xff]
        %v494 = vld [vmem:[#allocation2 + $0x58] sm:$0xff]
        %v495 = vld [vmem:[#allocation2 + $0x60] sm:$0xff]
        %v496 = vld [vmem:[#allocation2 + $0x68] sm:$0xff]
        %v497 = vld [vmem:[#allocation2 + $0x70] sm:$0xff]
        %v498 = vld [vmem:[#allocation2 + $0x78] sm:$0xff]
        %v499 = vld [vmem:[#allocation2 + $0x80] sm:$0xff]
        %v500 = vld [vmem:[#allocation2 + $0x88] sm:$0xff]
        %v501 = vld [vmem:[#allocation2 + $0x90] sm:$0xff]
        %v502 = vld [vmem:[#allocation2 + $0x98] sm:$0xff]
        %v503 = vld [vmem:[#allocation2 + $0xa0] sm:$0xff]
        %v504 = vld [vmem:[#allocation2 + $0xa8] sm:$0xff]
        %v505 = vld [vmem:[#allocation2 + $0xb0] sm:$0xff]
        %v506 = vld [vmem:[#allocation2 + $0xb8] sm:$0xff]
        %v507 = vld [vmem:[#allocation2 + $0xc0] sm:$0xff]
        %v508 = vld [vmem:[#allocation2 + $0xc8] sm:$0xff]
        %v509 = vld [vmem:[#allocation2 + $0xd0] sm:$0xff]
        %v510 = vld [vmem:[#allocation2 + $0xd8] sm:$0xff]
        %v511 = vld [vmem:[#allocation2 + $0xe0] sm:$0xff]
        %v512 = vld [vmem:[#allocation2 + $0xe8] sm:$0xff]
        %v513 = vld [vmem:[#allocation2 + $0xf0] sm:$0xff]
        %v514 = vld [vmem:[#allocation2 + $0xf8] sm:$0xff]
        %v515 = vld [vmem:[%s377] sm:$0xff]
        %v516 = vld [vmem:[%s377 + $0x8] sm:$0xff]
        %v517 = vld [vmem:[%s377 + $0x10] sm:$0xff]
        %v518 = vld [vmem:[%s377 + $0x18] sm:$0xff]
        %v519 = vld [vmem:[%s377 + $0x20] sm:$0xff]
        %v520 = vld [vmem:[%s377 + $0x28] sm:$0xff]
        %v521 = vld [vmem:[%s377 + $0x30] sm:$0xff]
        %v522 = vld [vmem:[%s377 + $0x38] sm:$0xff]
        %v523 = vld [vmem:[%s377 + $0x40] sm:$0xff]
        %v524 = vld [vmem:[%s377 + $0x48] sm:$0xff]
        %v525 = vld [vmem:[%s377 + $0x50] sm:$0xff]
        %v526 = vld [vmem:[%s377 + $0x58] sm:$0xff]
        %v527 = vld [vmem:[%s377 + $0x60] sm:$0xff]
        %v528 = vld [vmem:[%s377 + $0x68] sm:$0xff]
        %v529 = vld [vmem:[%s377 + $0x70] sm:$0xff]
        %v530 = vld [vmem:[%s377 + $0x78] sm:$0xff]
        %v531 = vld [vmem:[%s377 + $0x80] sm:$0xff]
        %v532 = vld [vmem:[%s377 + $0x88] sm:$0xff]
        %v533 = vld [vmem:[%s377 + $0x90] sm:$0xff]
        %v534 = vld [vmem:[%s377 + $0x98] sm:$0xff]
        %v535 = vld [vmem:[%s377 + $0xa0] sm:$0xff]
        %v536 = vld [vmem:[%s377 + $0xa8] sm:$0xff]
        %v537 = vld [vmem:[%s377 + $0xb0] sm:$0xff]
        %v538 = vld [vmem:[%s377 + $0xb8] sm:$0xff]
        %v539 = vld [vmem:[%s377 + $0xc0] sm:$0xff]
        %v540 = vld [vmem:[%s377 + $0xc8] sm:$0xff]
        %v541 = vld [vmem:[%s377 + $0xd0] sm:$0xff]
        %v542 = vld [vmem:[%s377 + $0xd8] sm:$0xff]
        %v543 = vld [vmem:[%s377 + $0xe0] sm:$0xff]
        %v544 = vld [vmem:[%s377 + $0xe8] sm:$0xff]
        %v545 = vld [vmem:[%s377 + $0xf0] sm:$0xff]
        %v546 = vld [vmem:[%s377 + $0xf8] sm:$0xff]
        %v547 = vld [vmem:[%s377 + $0x100] sm:$0xff]
        %v548 = vld [vmem:[%s377 + $0x108] sm:$0xff]
        %v549 = vld [vmem:[%s377 + $0x110] sm:$0xff]
        %v550 = vld [vmem:[%s377 + $0x118] sm:$0xff]
        %v551 = vld [vmem:[%s377 + $0x120] sm:$0xff]
        %v552 = vld [vmem:[%s377 + $0x128] sm:$0xff]
        %v553 = vld [vmem:[%s377 + $0x130] sm:$0xff]
        %v554 = vld [vmem:[%s377 + $0x138] sm:$0xff]
        %v555 = vld [vmem:[%s377 + $0x140] sm:$0xff]
        %v556 = vld [vmem:[%s377 + $0x148] sm:$0xff]
        %v557 = vld [vmem:[%s377 + $0x150] sm:$0xff]
        %v558 = vld [vmem:[%s377 + $0x158] sm:$0xff]
        %v559 = vld [vmem:[%s377 + $0x160] sm:$0xff]
        %v560 = vld [vmem:[%s377 + $0x168] sm:$0xff]
        %v561 = vld [vmem:[%s377 + $0x170] sm:$0xff]
        %v562 = vld [vmem:[%s377 + $0x178] sm:$0xff]
        %v563 = vld [vmem:[%s377 + $0x180] sm:$0xff]
        %v564 = vld [vmem:[%s377 + $0x188] sm:$0xff]
        %v565 = vld [vmem:[%s377 + $0x190] sm:$0xff]
        %v566 = vld [vmem:[%s377 + $0x198] sm:$0xff]
        %v567 = vld [vmem:[%s377 + $0x1a0] sm:$0xff]
        %v568 = vld [vmem:[%s377 + $0x1a8] sm:$0xff]
        %v569 = vld [vmem:[%s377 + $0x1b0] sm:$0xff]
        %v570 = vld [vmem:[%s377 + $0x1b8] sm:$0xff]
        %v571 = vld [vmem:[%s377 + $0x1c0] sm:$0xff]
        %v572 = vld [vmem:[%s377 + $0x1c8] sm:$0xff]
        %v573 = vld [vmem:[%s377 + $0x1d0] sm:$0xff]
        %v574 = vld [vmem:[%s377 + $0x1d8] sm:$0xff]
        %v575 = vld [vmem:[%s377 + $0x1e0] sm:$0xff]
        %v576 = vld [vmem:[%s377 + $0x1e8] sm:$0xff]
        %v577 = vld [vmem:[%s377 + $0x1f0] sm:$0xff]
        %v578 = vld [vmem:[%s377 + $0x1f8] sm:$0xff]
        %v579 = vld [vmem:[#allocation6] sm:$0xf]
        %v580 = vld [vmem:[#allocation6 + $0x4] sm:$0xf]
        %v581 = vld [vmem:[#allocation6 + $0x8] sm:$0xf]
        %v582 = vld [vmem:[#allocation6 + $0xc] sm:$0xf]
        %v583 = vld [vmem:[#allocation6 + $0x10] sm:$0xf]
        %v584 = vld [vmem:[#allocation6 + $0x14] sm:$0xf]
        %v585 = vld [vmem:[#allocation6 + $0x18] sm:$0xf]
        %v586 = vld [vmem:[#allocation6 + $0x1c] sm:$0xf]
        %v587 = vld [vmem:[#allocation6 + $0x20] sm:$0xf]
        %v588 = vld [vmem:[#allocation6 + $0x24] sm:$0xf]
        %v589 = vld [vmem:[#allocation6 + $0x28] sm:$0xf]
        %v590 = vld [vmem:[#allocation6 + $0x2c] sm:$0xf]
        %v591 = vld [vmem:[#allocation6 + $0x30] sm:$0xf]
        %v592 = vld [vmem:[#allocation6 + $0x34] sm:$0xf]
        %v593 = vld [vmem:[#allocation6 + $0x38] sm:$0xf]
        %v594 = vld [vmem:[#allocation6 + $0x3c] sm:$0xf]
        %v595 = vld [vmem:[#allocation6 + $0x40] sm:$0xf]
        %v596 = vld [vmem:[#allocation6 + $0x44] sm:$0xf]
        %v597 = vld [vmem:[#allocation6 + $0x48] sm:$0xf]
        %v598 = vld [vmem:[#allocation6 + $0x4c] sm:$0xf]
        %v599 = vld [vmem:[#allocation6 + $0x50] sm:$0xf]
        %v600 = vld [vmem:[#allocation6 + $0x54] sm:$0xf]
        %v601 = vld [vmem:[#allocation6 + $0x58] sm:$0xf]
        %v602 = vld [vmem:[#allocation6 + $0x5c] sm:$0xf]
        %v603 = vld [vmem:[#allocation6 + $0x60] sm:$0xf]
        %v604 = vld [vmem:[#allocation6 + $0x64] sm:$0xf]
        %v605 = vld [vmem:[#allocation6 + $0x68] sm:$0xf]
        %v606 = vld [vmem:[#allocation6 + $0x6c] sm:$0xf]
        %v607 = vld [vmem:[#allocation6 + $0x70] sm:$0xf]
        %v608 = vld [vmem:[#allocation6 + $0x74] sm:$0xf]
        %v609 = vld [vmem:[#allocation6 + $0x78] sm:$0xf]
        %v610 = vld [vmem:[#allocation6 + $0x7c] sm:$0xf]
        %v611 = vld [vmem:[#allocation6 + $0x80] sm:$0xf]
        %v612 = vld [vmem:[#allocation6 + $0x84] sm:$0xf]
        %v613 = vld [vmem:[#allocation6 + $0x88] sm:$0xf]
        %v614 = vld [vmem:[#allocation6 + $0x8c] sm:$0xf]
        %v615 = vld [vmem:[#allocation6 + $0x90] sm:$0xf]
        %v616 = vld [vmem:[#allocation6 + $0x94] sm:$0xf]
        %v617 = vld [vmem:[#allocation6 + $0x98] sm:$0xf]
        %v618 = vld [vmem:[#allocation6 + $0x9c] sm:$0xf]
        %v619 = vld [vmem:[#allocation6 + $0xa0] sm:$0xf]
        %v620 = vld [vmem:[#allocation6 + $0xa4] sm:$0xf]
        %v621 = vld [vmem:[#allocation6 + $0xa8] sm:$0xf]
        %v622 = vld [vmem:[#allocation6 + $0xac] sm:$0xf]
        %v623 = vld [vmem:[#allocation6 + $0xb0] sm:$0xf]
        %v624 = vld [vmem:[#allocation6 + $0xb4] sm:$0xf]
        %v625 = vld [vmem:[#allocation6 + $0xb8] sm:$0xf]
        %v626 = vld [vmem:[#allocation6 + $0xbc] sm:$0xf]
        %v627 = vld [vmem:[#allocation6 + $0xc0] sm:$0xf]
        %v628 = vld [vmem:[#allocation6 + $0xc4] sm:$0xf]
        %v629 = vld [vmem:[#allocation6 + $0xc8] sm:$0xf]
        %v630 = vld [vmem:[#allocation6 + $0xcc] sm:$0xf]
        %v631 = vld [vmem:[#allocation6 + $0xd0] sm:$0xf]
        %v632 = vld [vmem:[#allocation6 + $0xd4] sm:$0xf]
        %v633 = vld [vmem:[#allocation6 + $0xd8] sm:$0xf]
        %v634 = vld [vmem:[#allocation6 + $0xdc] sm:$0xf]
        %v635 = vld [vmem:[#allocation6 + $0xe0] sm:$0xf]
        %v636 = vld [vmem:[#allocation6 + $0xe4] sm:$0xf]
        %v637 = vld [vmem:[#allocation6 + $0xe8] sm:$0xf]
        %v638 = vld [vmem:[#allocation6 + $0xec] sm:$0xf]
        %v639 = vld [vmem:[#allocation6 + $0xf0] sm:$0xf]
        %v640 = vld [vmem:[#allocation6 + $0xf4] sm:$0xf]
        %v641 = vld [vmem:[#allocation6 + $0xf8] sm:$0xf]
        %v642 = vld [vmem:[#allocation6 + $0xfc] sm:$0xf]
        %v707 = vunpack.c.l.b16 %v515
        %v708 = vunpack.c.h.b16 %v515
        %v709 = vunpack.c.l.b16 %v516
        %v710 = vunpack.c.h.b16 %v516
        %v711 = vunpack.c.l.b16 %v517
        %v712 = vunpack.c.h.b16 %v517
        %v713 = vunpack.c.l.b16 %v518
        %v714 = vunpack.c.h.b16 %v518
        %v715 = vunpack.c.l.b16 %v519
        %v716 = vunpack.c.h.b16 %v519
        %v717 = vunpack.c.l.b16 %v520
        %v718 = vunpack.c.h.b16 %v520
        %v719 = vunpack.c.l.b16 %v521
        %v720 = vunpack.c.h.b16 %v521
        %v721 = vunpack.c.l.b16 %v522
        %v722 = vunpack.c.h.b16 %v522
        %v723 = vunpack.c.l.b16 %v523
        %v724 = vunpack.c.h.b16 %v523
        %v725 = vunpack.c.l.b16 %v524
        %v726 = vunpack.c.h.b16 %v524
        %v727 = vunpack.c.l.b16 %v525
        %v728 = vunpack.c.h.b16 %v525
        %v729 = vunpack.c.l.b16 %v526
        %v730 = vunpack.c.h.b16 %v526
        %v731 = vunpack.c.l.b16 %v527
        %v732 = vunpack.c.h.b16 %v527
        %v733 = vunpack.c.l.b16 %v528
        %v734 = vunpack.c.h.b16 %v528
        %v735 = vunpack.c.l.b16 %v529
        %v736 = vunpack.c.h.b16 %v529
        %v737 = vunpack.c.l.b16 %v530
        %v738 = vunpack.c.h.b16 %v530
        %v739 = vunpack.c.l.b16 %v531
        %v740 = vunpack.c.h.b16 %v531
        %v741 = vunpack.c.l.b16 %v532
        %v742 = vunpack.c.h.b16 %v532
        %v743 = vunpack.c.l.b16 %v533
        %v744 = vunpack.c.h.b16 %v533
        %v745 = vunpack.c.l.b16 %v534
        %v746 = vunpack.c.h.b16 %v534
        %v747 = vunpack.c.l.b16 %v535
        %v748 = vunpack.c.h.b16 %v535
        %v749 = vunpack.c.l.b16 %v536
        %v750 = vunpack.c.h.b16 %v536
        %v751 = vunpack.c.l.b16 %v537
        %v752 = vunpack.c.h.b16 %v537
        %v753 = vunpack.c.l.b16 %v538
        %v754 = vunpack.c.h.b16 %v538
        %v755 = vunpack.c.l.b16 %v539
        %v756 = vunpack.c.h.b16 %v539
        %v757 = vunpack.c.l.b16 %v540
        %v758 = vunpack.c.h.b16 %v540
        %v759 = vunpack.c.l.b16 %v541
        %v760 = vunpack.c.h.b16 %v541
        %v761 = vunpack.c.l.b16 %v542
        %v762 = vunpack.c.h.b16 %v542
        %v763 = vunpack.c.l.b16 %v543
        %v764 = vunpack.c.h.b16 %v543
        %v765 = vunpack.c.l.b16 %v544
        %v766 = vunpack.c.h.b16 %v544
        %v767 = vunpack.c.l.b16 %v545
        %v768 = vunpack.c.h.b16 %v545
        %v769 = vunpack.c.l.b16 %v546
        %v770 = vunpack.c.h.b16 %v546
        %v771 = vunpack.c.l.b16 %v547
        %v772 = vunpack.c.h.b16 %v547
        %v773 = vunpack.c.l.b16 %v548
        %v774 = vunpack.c.h.b16 %v548
        %v775 = vunpack.c.l.b16 %v549
        %v776 = vunpack.c.h.b16 %v549
        %v777 = vunpack.c.l.b16 %v550
        %v778 = vunpack.c.h.b16 %v550
        %v779 = vunpack.c.l.b16 %v551
        %v780 = vunpack.c.h.b16 %v551
        %v781 = vunpack.c.l.b16 %v552
        %v782 = vunpack.c.h.b16 %v552
        %v783 = vunpack.c.l.b16 %v553
        %v784 = vunpack.c.h.b16 %v553
        %v785 = vunpack.c.l.b16 %v554
        %v786 = vunpack.c.h.b16 %v554
        %v787 = vunpack.c.l.b16 %v555
        %v788 = vunpack.c.h.b16 %v555
        %v789 = vunpack.c.l.b16 %v556
        %v790 = vunpack.c.h.b16 %v556
        %v791 = vunpack.c.l.b16 %v557
        %v792 = vunpack.c.h.b16 %v557
        %v793 = vunpack.c.l.b16 %v558
        %v794 = vunpack.c.h.b16 %v558
        %v795 = vunpack.c.l.b16 %v559
        %v796 = vunpack.c.h.b16 %v559
        %v797 = vunpack.c.l.b16 %v560
        %v798 = vunpack.c.h.b16 %v560
        %v799 = vunpack.c.l.b16 %v561
        %v800 = vunpack.c.h.b16 %v561
        %v801 = vunpack.c.l.b16 %v562
        %v802 = vunpack.c.h.b16 %v562
        %v803 = vunpack.c.l.b16 %v563
        %v804 = vunpack.c.h.b16 %v563
        %v805 = vunpack.c.l.b16 %v564
        %v806 = vunpack.c.h.b16 %v564
        %v807 = vunpack.c.l.b16 %v565
        %v808 = vunpack.c.h.b16 %v565
        %v809 = vunpack.c.l.b16 %v566
        %v810 = vunpack.c.h.b16 %v566
        %v811 = vunpack.c.l.b16 %v567
        %v812 = vunpack.c.h.b16 %v567
        %v813 = vunpack.c.l.b16 %v568
        %v814 = vunpack.c.h.b16 %v568
        %v815 = vunpack.c.l.b16 %v569
        %v816 = vunpack.c.h.b16 %v569
        %v817 = vunpack.c.l.b16 %v570
        %v818 = vunpack.c.h.b16 %v570
        %v819 = vunpack.c.l.b16 %v571
        %v820 = vunpack.c.h.b16 %v571
        %v821 = vunpack.c.l.b16 %v572
        %v822 = vunpack.c.h.b16 %v572
        %v823 = vunpack.c.l.b16 %v573
        %v824 = vunpack.c.h.b16 %v573
        %v825 = vunpack.c.l.b16 %v574
        %v826 = vunpack.c.h.b16 %v574
        %v827 = vunpack.c.l.b16 %v575
        %v828 = vunpack.c.h.b16 %v575
        %v829 = vunpack.c.l.b16 %v576
        %v830 = vunpack.c.h.b16 %v576
        %v831 = vunpack.c.l.b16 %v577
        %v832 = vunpack.c.h.b16 %v577
        %v833 = vunpack.c.l.b16 %v578
        %v834 = vunpack.c.h.b16 %v578
        %v835 = vpack.c.b16 %v711, %v707
        %v836 = vpack.c.b16 %v712, %v708
        %v837 = vpack.c.b16 %v713, %v709
        %v838 = vpack.c.b16 %v714, %v710
        %v839 = vpack.c.b16 %v719, %v715
        %v840 = vpack.c.b16 %v720, %v716
        %v841 = vpack.c.b16 %v721, %v717
        %v842 = vpack.c.b16 %v722, %v718
        %v843 = vpack.c.b16 %v727, %v723
        %v844 = vpack.c.b16 %v728, %v724
        %v845 = vpack.c.b16 %v729, %v725
        %v846 = vpack.c.b16 %v730, %v726
        %v847 = vpack.c.b16 %v735, %v731
        %v848 = vpack.c.b16 %v736, %v732
        %v849 = vpack.c.b16 %v737, %v733
        %v850 = vpack.c.b16 %v738, %v734
        %v851 = vpack.c.b16 %v743, %v739
        %v852 = vpack.c.b16 %v744, %v740
        %v853 = vpack.c.b16 %v745, %v741
        %v854 = vpack.c.b16 %v746, %v742
        %v855 = vpack.c.b16 %v751, %v747
        %v856 = vpack.c.b16 %v752, %v748
        %v857 = vpack.c.b16 %v753, %v749
        %v858 = vpack.c.b16 %v754, %v750
        %v859 = vpack.c.b16 %v759, %v755
        %v860 = vpack.c.b16 %v760, %v756
        %v861 = vpack.c.b16 %v761, %v757
        %v862 = vpack.c.b16 %v762, %v758
        %v863 = vpack.c.b16 %v767, %v763
        %v864 = vpack.c.b16 %v768, %v764
        %v865 = vpack.c.b16 %v769, %v765
        %v866 = vpack.c.b16 %v770, %v766
        %v867 = vpack.c.b16 %v775, %v771
        %v868 = vpack.c.b16 %v776, %v772
        %v869 = vpack.c.b16 %v777, %v773
        %v870 = vpack.c.b16 %v778, %v774
        %v871 = vpack.c.b16 %v783, %v779
        %v872 = vpack.c.b16 %v784, %v780
        %v873 = vpack.c.b16 %v785, %v781
        %v874 = vpack.c.b16 %v786, %v782
        %v875 = vpack.c.b16 %v791, %v787
        %v876 = vpack.c.b16 %v792, %v788
        %v877 = vpack.c.b16 %v793, %v789
        %v878 = vpack.c.b16 %v794, %v790
        %v879 = vpack.c.b16 %v799, %v795
        %v880 = vpack.c.b16 %v800, %v796
        %v881 = vpack.c.b16 %v801, %v797
        %v882 = vpack.c.b16 %v802, %v798
        %v883 = vpack.c.b16 %v807, %v803
        %v884 = vpack.c.b16 %v808, %v804
        %v885 = vpack.c.b16 %v809, %v805
        %v886 = vpack.c.b16 %v810, %v806
        %v887 = vpack.c.b16 %v815, %v811
        %v888 = vpack.c.b16 %v816, %v812
        %v889 = vpack.c.b16 %v817, %v813
        %v890 = vpack.c.b16 %v818, %v814
        %v891 = vpack.c.b16 %v823, %v819
        %v892 = vpack.c.b16 %v824, %v820
        %v893 = vpack.c.b16 %v825, %v821
        %v894 = vpack.c.b16 %v826, %v822
        %v895 = vpack.c.b16 %v831, %v827
        %v896 = vpack.c.b16 %v832, %v828
        %v897 = vpack.c.b16 %v833, %v829
        %v898 = vpack.c.b16 %v834, %v830
        %v1027 = vunpack.c.l.b16 %v579
        %v1028 = vunpack.c.l.b16 %v580
        %v1029 = vunpack.c.l.b16 %v581
        %v1030 = vunpack.c.l.b16 %v582
        %v1031 = vunpack.c.l.b16 %v583
        %v1032 = vunpack.c.l.b16 %v584
        %v1033 = vunpack.c.l.b16 %v585
        %v1034 = vunpack.c.l.b16 %v586
        %v1035 = vunpack.c.l.b16 %v587
        %v1036 = vunpack.c.l.b16 %v588
        %v1037 = vunpack.c.l.b16 %v589
        %v1038 = vunpack.c.l.b16 %v590
        %v1039 = vunpack.c.l.b16 %v591
        %v1040 = vunpack.c.l.b16 %v592
        %v1041 = vunpack.c.l.b16 %v593
        %v1042 = vunpack.c.l.b16 %v594
        %v1043 = vunpack.c.l.b16 %v595
        %v1044 = vunpack.c.l.b16 %v596
        %v1045 = vunpack.c.l.b16 %v597
        %v1046 = vunpack.c.l.b16 %v598
        %v1047 = vunpack.c.l.b16 %v599
        %v1048 = vunpack.c.l.b16 %v600
        %v1049 = vunpack.c.l.b16 %v601
        %v1050 = vunpack.c.l.b16 %v602
        %v1051 = vunpack.c.l.b16 %v603
        %v1052 = vunpack.c.l.b16 %v604
        %v1053 = vunpack.c.l.b16 %v605
        %v1054 = vunpack.c.l.b16 %v606
        %v1055 = vunpack.c.l.b16 %v607
        %v1056 = vunpack.c.l.b16 %v608
        %v1057 = vunpack.c.l.b16 %v609
        %v1058 = vunpack.c.l.b16 %v610
        %v1059 = vunpack.c.l.b16 %v611
        %v1060 = vunpack.c.l.b16 %v612
        %v1061 = vunpack.c.l.b16 %v613
        %v1062 = vunpack.c.l.b16 %v614
        %v1063 = vunpack.c.l.b16 %v615
        %v1064 = vunpack.c.l.b16 %v616
        %v1065 = vunpack.c.l.b16 %v617
        %v1066 = vunpack.c.l.b16 %v618
        %v1067 = vunpack.c.l.b16 %v619
        %v1068 = vunpack.c.l.b16 %v620
        %v1069 = vunpack.c.l.b16 %v621
        %v1070 = vunpack.c.l.b16 %v622
        %v1071 = vunpack.c.l.b16 %v623
        %v1072 = vunpack.c.l.b16 %v624
        %v1073 = vunpack.c.l.b16 %v625
        %v1074 = vunpack.c.l.b16 %v626
        %v1075 = vunpack.c.l.b16 %v627
        %v1076 = vunpack.c.l.b16 %v628
        %v1077 = vunpack.c.l.b16 %v629
        %v1078 = vunpack.c.l.b16 %v630
        %v1079 = vunpack.c.l.b16 %v631
        %v1080 = vunpack.c.l.b16 %v632
        %v1081 = vunpack.c.l.b16 %v633
        %v1082 = vunpack.c.l.b16 %v634
        %v1083 = vunpack.c.l.b16 %v635
        %v1084 = vunpack.c.l.b16 %v636
        %v1085 = vunpack.c.l.b16 %v637
        %v1086 = vunpack.c.l.b16 %v638
        %v1087 = vunpack.c.l.b16 %v639
        %v1088 = vunpack.c.l.b16 %v640
        %v1089 = vunpack.c.l.b16 %v641
        %v1090 = vunpack.c.l.b16 %v642
        %v1091 = vpack.c.b16 %v1028, %v1027
        %v1092 = vpack.c.b16 %v1030, %v1029
        %v1093 = vpack.c.b16 %v1032, %v1031
        %v1094 = vpack.c.b16 %v1034, %v1033
        %v1095 = vpack.c.b16 %v1036, %v1035
        %v1096 = vpack.c.b16 %v1038, %v1037
        %v1097 = vpack.c.b16 %v1040, %v1039
        %v1098 = vpack.c.b16 %v1042, %v1041
        %v1099 = vpack.c.b16 %v1044, %v1043
        %v1100 = vpack.c.b16 %v1046, %v1045
        %v1101 = vpack.c.b16 %v1048, %v1047
        %v1102 = vpack.c.b16 %v1050, %v1049
        %v1103 = vpack.c.b16 %v1052, %v1051
        %v1104 = vpack.c.b16 %v1054, %v1053
        %v1105 = vpack.c.b16 %v1056, %v1055
        %v1106 = vpack.c.b16 %v1058, %v1057
        %v1107 = vpack.c.b16 %v1060, %v1059
        %v1108 = vpack.c.b16 %v1062, %v1061
        %v1109 = vpack.c.b16 %v1064, %v1063
        %v1110 = vpack.c.b16 %v1066, %v1065
        %v1111 = vpack.c.b16 %v1068, %v1067
        %v1112 = vpack.c.b16 %v1070, %v1069
        %v1113 = vpack.c.b16 %v1072, %v1071
        %v1114 = vpack.c.b16 %v1074, %v1073
        %v1115 = vpack.c.b16 %v1076, %v1075
        %v1116 = vpack.c.b16 %v1078, %v1077
        %v1117 = vpack.c.b16 %v1080, %v1079
        %v1118 = vpack.c.b16 %v1082, %v1081
        %v1119 = vpack.c.b16 %v1084, %v1083
        %v1120 = vpack.c.b16 %v1086, %v1085
        %v1121 = vpack.c.b16 %v1088, %v1087
        %v1122 = vpack.c.b16 %v1090, %v1089
        %1155 = vmatprep.subr.bf16.mxu0 0
        %1156 = vmatpush1.bf16.msra.mxu0 %v1091
        %1157 = vmatprep.subr.bf16.mxu0 0
        %1158 = vmatpush1.bf16.msra.mxu0 %v1092
        %1159 = vmatprep.subr.bf16.mxu0 0
        %1160 = vmatpush1.bf16.msra.mxu0 %v1093
        %1161 = vmatprep.subr.bf16.mxu0 0
        %1162 = vmatpush1.bf16.msra.mxu0 %v1094
        %1163 = vmatprep.subr.bf16.mxu0 0
        %1164 = vmatpush1.bf16.msra.mxu0 %v1095
        %1165 = vmatprep.subr.bf16.mxu0 0
        %1166 = vmatpush1.bf16.msra.mxu0 %v1096
        %1167 = vmatprep.subr.bf16.mxu0 0
        %1168 = vmatpush1.bf16.msra.mxu0 %v1097
        %1169 = vmatprep.subr.bf16.mxu0 0
        %1170 = vmatpush1.bf16.msra.mxu0 %v1098
        %1171 = vmatprep.subr.bf16.mxu0 0
        %1172 = vmatpush1.bf16.msra.mxu0 %v1099
        %1173 = vmatprep.subr.bf16.mxu0 0
        %1174 = vmatpush1.bf16.msra.mxu0 %v1100
        %1175 = vmatprep.subr.bf16.mxu0 0
        %1176 = vmatpush1.bf16.msra.mxu0 %v1101
        %1177 = vmatprep.subr.bf16.mxu0 0
        %1178 = vmatpush1.bf16.msra.mxu0 %v1102
        %1179 = vmatprep.subr.bf16.mxu0 0
        %1180 = vmatpush1.bf16.msra.mxu0 %v1103
        %1181 = vmatprep.subr.bf16.mxu0 0
        %1182 = vmatpush1.bf16.msra.mxu0 %v1104
        %1183 = vmatprep.subr.bf16.mxu0 0
        %1184 = vmatpush1.bf16.msra.mxu0 %v1105
        %1185 = vmatprep.subr.bf16.mxu0 0
        %1186 = vmatpush1.bf16.msra.mxu0 %v1106
        %1187 = vmatprep.mubr.bf16.mxu0 %v836
        %1188 = vmatmul.mubr.bf16.gmra.mrb[0].mxu0 %v835
        %v1189 = vpop.f32.mrb[0].mxu0
        %v1190 = vadd.f32 0.0, %v1189
        %v1191 = vpop.f32.mrb[0].mxu0
        %v1192 = vpop.f32.mrb[0].mxu0
        %v1193 = vadd.f32 0.0, %v1192
        %v1194 = vpop.f32.mrb[0].mxu0
        %1195 = vmatprep.mubr.bf16.mxu0 %v840
        %1196 = vmatmul.mubr.bf16.gmra.mrb[0].mxu0 %v839
        %v1197 = vpop.f32.mrb[0].mxu0
        %v1198 = vadd.f32 0.0, %v1197
        %v1199 = vpop.f32.mrb[0].mxu0
        %v1200 = vpop.f32.mrb[0].mxu0
        %v1201 = vadd.f32 0.0, %v1200
        %v1202 = vpop.f32.mrb[0].mxu0
        %1203 = vmatprep.mubr.bf16.mxu0 %v844
        %1204 = vmatmul.mubr.bf16.gmra.mrb[0].mxu0 %v843
        %v1205 = vpop.f32.mrb[0].mxu0
        %v1206 = vadd.f32 0.0, %v1205
        %v1207 = vpop.f32.mrb[0].mxu0
        %v1208 = vpop.f32.mrb[0].mxu0
        %v1209 = vadd.f32 0.0, %v1208
        %v1210 = vpop.f32.mrb[0].mxu0
        %1211 = vmatprep.mubr.bf16.mxu0 %v848
        %1212 = vmatmul.mubr.bf16.gmra.mrb[0].mxu0 %v847
        %v1213 = vpop.f32.mrb[0].mxu0
        %v1214 = vadd.f32 0.0, %v1213
        %v1215 = vpop.f32.mrb[0].mxu0
        %v1216 = vpop.f32.mrb[0].mxu0
        %v1217 = vadd.f32 0.0, %v1216
        %v1218 = vpop.f32.mrb[0].mxu0
        %1219 = vmatprep.mubr.bf16.mxu0 %v852
        %1220 = vmatmul.mubr.bf16.gmra.mrb[0].mxu0 %v851
        %v1221 = vpop.f32.mrb[0].mxu0
        %v1222 = vadd.f32 0.0, %v1221
        %v1223 = vpop.f32.mrb[0].mxu0
        %v1224 = vpop.f32.mrb[0].mxu0
        %v1225 = vadd.f32 0.0, %v1224
        %v1226 = vpop.f32.mrb[0].mxu0
        %1227 = vmatprep.mubr.bf16.mxu0 %v856
        %1228 = vmatmul.mubr.bf16.gmra.mrb[0].mxu0 %v855
        %v1229 = vpop.f32.mrb[0].mxu0
        %v1230 = vadd.f32 0.0, %v1229
        %v1231 = vpop.f32.mrb[0].mxu0
        %v1232 = vpop.f32.mrb[0].mxu0
        %v1233 = vadd.f32 0.0, %v1232
        %v1234 = vpop.f32.mrb[0].mxu0
        %1235 = vmatprep.mubr.bf16.mxu0 %v860
        %1236 = vmatmul.mubr.bf16.gmra.mrb[0].mxu0 %v859
        %v1237 = vpop.f32.mrb[0].mxu0
        %v1238 = vadd.f32 0.0, %v1237
        %v1239 = vpop.f32.mrb[0].mxu0
        %v1240 = vpop.f32.mrb[0].mxu0
        %v1241 = vadd.f32 0.0, %v1240
        %v1242 = vpop.f32.mrb[0].mxu0
        %1243 = vmatprep.mubr.bf16.mxu0 %v864
        %1244 = vmatmul.mubr.bf16.gmra.mrb[0].mxu0 %v863
        %v1245 = vpop.f32.mrb[0].mxu0
        %v1246 = vadd.f32 0.0, %v1245
        %v1247 = vpop.f32.mrb[0].mxu0
        %v1248 = vpop.f32.mrb[0].mxu0
        %v1249 = vadd.f32 0.0, %v1248
        %v1250 = vpop.f32.mrb[0].mxu0
        %1251 = vmatprep.mubr.bf16.mxu0 %v868
        %1252 = vmatmul.mubr.bf16.gmra.mrb[0].mxu0 %v867
        %v1253 = vpop.f32.mrb[0].mxu0
        %v1254 = vadd.f32 0.0, %v1253
        %v1255 = vpop.f32.mrb[0].mxu0
        %v1256 = vpop.f32.mrb[0].mxu0
        %v1257 = vadd.f32 0.0, %v1256
        %v1258 = vpop.f32.mrb[0].mxu0
        %1259 = vmatprep.mubr.bf16.mxu0 %v872
        %1260 = vmatmul.mubr.bf16.gmra.mrb[0].mxu0 %v871
        %v1261 = vpop.f32.mrb[0].mxu0
        %v1262 = vadd.f32 0.0, %v1261
        %v1263 = vpop.f32.mrb[0].mxu0
        %v1264 = vpop.f32.mrb[0].mxu0
        %v1265 = vadd.f32 0.0, %v1264
        %v1266 = vpop.f32.mrb[0].mxu0
        %1267 = vmatprep.mubr.bf16.mxu0 %v876
        %1268 = vmatmul.mubr.bf16.gmra.mrb[0].mxu0 %v875
        %v1269 = vpop.f32.mrb[0].mxu0
        %v1270 = vadd.f32 0.0, %v1269
        %v1271 = vpop.f32.mrb[0].mxu0
        %v1272 = vpop.f32.mrb[0].mxu0
        %v1273 = vadd.f32 0.0, %v1272
        %v1274 = vpop.f32.mrb[0].mxu0
        %1275 = vmatprep.mubr.bf16.mxu0 %v880
        %1276 = vmatmul.mubr.bf16.gmra.mrb[0].mxu0 %v879
        %v1277 = vpop.f32.mrb[0].mxu0
        %v1278 = vadd.f32 0.0, %v1277
        %v1279 = vpop.f32.mrb[0].mxu0
        %v1280 = vpop.f32.mrb[0].mxu0
        %v1281 = vadd.f32 0.0, %v1280
        %v1282 = vpop.f32.mrb[0].mxu0
        %1283 = vmatprep.mubr.bf16.mxu0 %v884
        %1284 = vmatmul.mubr.bf16.gmra.mrb[0].mxu0 %v883
        %v1285 = vpop.f32.mrb[0].mxu0
        %v1286 = vadd.f32 0.0, %v1285
        %v1287 = vpop.f32.mrb[0].mxu0
        %v1288 = vpop.f32.mrb[0].mxu0
        %v1289 = vadd.f32 0.0, %v1288
        %v1290 = vpop.f32.mrb[0].mxu0
        %1291 = vmatprep.mubr.bf16.mxu0 %v888
        %1292 = vmatmul.mubr.bf16.gmra.mrb[0].mxu0 %v887
        %v1293 = vpop.f32.mrb[0].mxu0
        %v1294 = vadd.f32 0.0, %v1293
        %v1295 = vpop.f32.mrb[0].mxu0
        %v1296 = vpop.f32.mrb[0].mxu0
        %v1297 = vadd.f32 0.0, %v1296
        %v1298 = vpop.f32.mrb[0].mxu0
        %1299 = vmatprep.mubr.bf16.mxu0 %v892
        %1300 = vmatmul.mubr.bf16.gmra.mrb[0].mxu0 %v891
        %v1301 = vpop.f32.mrb[0].mxu0
        %v1302 = vadd.f32 0.0, %v1301
        %v1303 = vpop.f32.mrb[0].mxu0
        %v1304 = vpop.f32.mrb[0].mxu0
        %v1305 = vadd.f32 0.0, %v1304
        %v1306 = vpop.f32.mrb[0].mxu0
        %1307 = vmatprep.mubr.bf16.mxu0 %v896
        %1308 = vmatmul.mubr.bf16.gmra.mrb[0].mxu0 %v895
        %v1309 = vpop.f32.mrb[0].mxu0
        %v1310 = vadd.f32 0.0, %v1309
        %v1311 = vpop.f32.mrb[0].mxu0
        %v1312 = vpop.f32.mrb[0].mxu0
        %v1313 = vadd.f32 0.0, %v1312
        %v1314 = vpop.f32.mrb[0].mxu0
        %1315 = vdwg.mxu0
        %1316 = vmatprep.subr.bf16.mxu0 0
        %1317 = vmatpush1.bf16.msra.mxu0 %v1107
        %1318 = vmatprep.subr.bf16.mxu0 0
        %1319 = vmatpush1.bf16.msra.mxu0 %v1108
        %1320 = vmatprep.subr.bf16.mxu0 0
        %1321 = vmatpush1.bf16.msra.mxu0 %v1109
        %1322 = vmatprep.subr.bf16.mxu0 0
        %1323 = vmatpush1.bf16.msra.mxu0 %v1110
        %1324 = vmatprep.subr.bf16.mxu0 0
        %1325 = vmatpush1.bf16.msra.mxu0 %v1111
        %1326 = vmatprep.subr.bf16.mxu0 0
        %1327 = vmatpush1.bf16.msra.mxu0 %v1112
        %1328 = vmatprep.subr.bf16.mxu0 0
        %1329 = vmatpush1.bf16.msra.mxu0 %v1113
        %1330 = vmatprep.subr.bf16.mxu0 0
        %1331 = vmatpush1.bf16.msra.mxu0 %v1114
        %1332 = vmatprep.subr.bf16.mxu0 0
        %1333 = vmatpush1.bf16.msra.mxu0 %v1115
        %1334 = vmatprep.subr.bf16.mxu0 0
        %1335 = vmatpush1.bf16.msra.mxu0 %v1116
        %1336 = vmatprep.subr.bf16.mxu0 0
        %1337 = vmatpush1.bf16.msra.mxu0 %v1117
        %1338 = vmatprep.subr.bf16.mxu0 0
        %1339 = vmatpush1.bf16.msra.mxu0 %v1118
        %1340 = vmatprep.subr.bf16.mxu0 0
        %1341 = vmatpush1.bf16.msra.mxu0 %v1119
        %1342 = vmatprep.subr.bf16.mxu0 0
        %1343 = vmatpush1.bf16.msra.mxu0 %v1120
        %1344 = vmatprep.subr.bf16.mxu0 0
        %1345 = vmatpush1.bf16.msra.mxu0 %v1121
        %1346 = vmatprep.subr.bf16.mxu0 0
        %1347 = vmatpush1.bf16.msra.mxu0 %v1122
        %1348 = vmatprep.mubr.bf16.mxu0 %v838
        %1349 = vmatmul.mubr.bf16.gmra.mrb[0].mxu0 %v837
        %v1350 = vpop.f32.mrb[0].mxu0
        %v1351 = vadd.f32 %v1190, %v1350
        %v1352 = vpop.f32.mrb[0].mxu0
        %v1353 = vpop.f32.mrb[0].mxu0
        %v1354 = vadd.f32 %v1193, %v1353
        %v1355 = vpop.f32.mrb[0].mxu0
        %1356 = vmatprep.mubr.bf16.mxu0 %v842
        %1357 = vmatmul.mubr.bf16.gmra.mrb[0].mxu0 %v841
        %v1358 = vpop.f32.mrb[0].mxu0
        %v1359 = vadd.f32 %v1198, %v1358
        %v1360 = vpop.f32.mrb[0].mxu0
        %v1361 = vpop.f32.mrb[0].mxu0
        %v1362 = vadd.f32 %v1201, %v1361
        %v1363 = vpop.f32.mrb[0].mxu0
        %1364 = vmatprep.mubr.bf16.mxu0 %v846
        %1365 = vmatmul.mubr.bf16.gmra.mrb[0].mxu0 %v845
        %v1366 = vpop.f32.mrb[0].mxu0
        %v1367 = vadd.f32 %v1206, %v1366
        %v1368 = vpop.f32.mrb[0].mxu0
        %v1369 = vpop.f32.mrb[0].mxu0
        %v1370 = vadd.f32 %v1209, %v1369
        %v1371 = vpop.f32.mrb[0].mxu0
        %1372 = vmatprep.mubr.bf16.mxu0 %v850
        %1373 = vmatmul.mubr.bf16.gmra.mrb[0].mxu0 %v849
        %v1374 = vpop.f32.mrb[0].mxu0
        %v1375 = vadd.f32 %v1214, %v1374
        %v1376 = vpop.f32.mrb[0].mxu0
        %v1377 = vpop.f32.mrb[0].mxu0
        %v1378 = vadd.f32 %v1217, %v1377
        %v1379 = vpop.f32.mrb[0].mxu0
        %1380 = vmatprep.mubr.bf16.mxu0 %v854
        %1381 = vmatmul.mubr.bf16.gmra.mrb[0].mxu0 %v853
        %v1382 = vpop.f32.mrb[0].mxu0
        %v1383 = vadd.f32 %v1222, %v1382
        %v1384 = vpop.f32.mrb[0].mxu0
        %v1385 = vpop.f32.mrb[0].mxu0
        %v1386 = vadd.f32 %v1225, %v1385
        %v1387 = vpop.f32.mrb[0].mxu0
        %1388 = vmatprep.mubr.bf16.mxu0 %v858
        %1389 = vmatmul.mubr.bf16.gmra.mrb[0].mxu0 %v857
        %v1390 = vpop.f32.mrb[0].mxu0
        %v1391 = vadd.f32 %v1230, %v1390
        %v1392 = vpop.f32.mrb[0].mxu0
        %v1393 = vpop.f32.mrb[0].mxu0
        %v1394 = vadd.f32 %v1233, %v1393
        %v1395 = vpop.f32.mrb[0].mxu0
        %1396 = vmatprep.mubr.bf16.mxu0 %v862
        %1397 = vmatmul.mubr.bf16.gmra.mrb[0].mxu0 %v861
        %v1398 = vpop.f32.mrb[0].mxu0
        %v1399 = vadd.f32 %v1238, %v1398
        %v1400 = vpop.f32.mrb[0].mxu0
        %v1401 = vpop.f32.mrb[0].mxu0
        %v1402 = vadd.f32 %v1241, %v1401
        %v1403 = vpop.f32.mrb[0].mxu0
        %1404 = vmatprep.mubr.bf16.mxu0 %v866
        %1405 = vmatmul.mubr.bf16.gmra.mrb[0].mxu0 %v865
        %v1406 = vpop.f32.mrb[0].mxu0
        %v1407 = vadd.f32 %v1246, %v1406
        %v1408 = vpop.f32.mrb[0].mxu0
        %v1409 = vpop.f32.mrb[0].mxu0
        %v1410 = vadd.f32 %v1249, %v1409
        %v1411 = vpop.f32.mrb[0].mxu0
        %1412 = vmatprep.mubr.bf16.mxu0 %v870
        %1413 = vmatmul.mubr.bf16.gmra.mrb[0].mxu0 %v869
        %v1414 = vpop.f32.mrb[0].mxu0
        %v1415 = vadd.f32 %v1254, %v1414
        %v1416 = vpop.f32.mrb[0].mxu0
        %v1417 = vpop.f32.mrb[0].mxu0
        %v1418 = vadd.f32 %v1257, %v1417
        %v1419 = vpop.f32.mrb[0].mxu0
        %1420 = vmatprep.mubr.bf16.mxu0 %v874
        %1421 = vmatmul.mubr.bf16.gmra.mrb[0].mxu0 %v873
        %v1422 = vpop.f32.mrb[0].mxu0
        %v1423 = vadd.f32 %v1262, %v1422
        %v1424 = vpop.f32.mrb[0].mxu0
        %v1425 = vpop.f32.mrb[0].mxu0
        %v1426 = vadd.f32 %v1265, %v1425
        %v1427 = vpop.f32.mrb[0].mxu0
        %1428 = vmatprep.mubr.bf16.mxu0 %v878
        %1429 = vmatmul.mubr.bf16.gmra.mrb[0].mxu0 %v877
        %v1430 = vpop.f32.mrb[0].mxu0
        %v1431 = vadd.f32 %v1270, %v1430
        %v1432 = vpop.f32.mrb[0].mxu0
        %v1433 = vpop.f32.mrb[0].mxu0
        %v1434 = vadd.f32 %v1273, %v1433
        %v1435 = vpop.f32.mrb[0].mxu0
        %1436 = vmatprep.mubr.bf16.mxu0 %v882
        %1437 = vmatmul.mubr.bf16.gmra.mrb[0].mxu0 %v881
        %v1438 = vpop.f32.mrb[0].mxu0
        %v1439 = vadd.f32 %v1278, %v1438
        %v1440 = vpop.f32.mrb[0].mxu0
        %v1441 = vpop.f32.mrb[0].mxu0
        %v1442 = vadd.f32 %v1281, %v1441
        %v1443 = vpop.f32.mrb[0].mxu0
        %1444 = vmatprep.mubr.bf16.mxu0 %v886
        %1445 = vmatmul.mubr.bf16.gmra.mrb[0].mxu0 %v885
        %v1446 = vpop.f32.mrb[0].mxu0
        %v1447 = vadd.f32 %v1286, %v1446
        %v1448 = vpop.f32.mrb[0].mxu0
        %v1449 = vpop.f32.mrb[0].mxu0
        %v1450 = vadd.f32 %v1289, %v1449
        %v1451 = vpop.f32.mrb[0].mxu0
        %1452 = vmatprep.mubr.bf16.mxu0 %v890
        %1453 = vmatmul.mubr.bf16.gmra.mrb[0].mxu0 %v889
        %v1454 = vpop.f32.mrb[0].mxu0
        %v1455 = vadd.f32 %v1294, %v1454
        %v1456 = vpop.f32.mrb[0].mxu0
        %v1457 = vpop.f32.mrb[0].mxu0
        %v1458 = vadd.f32 %v1297, %v1457
        %v1459 = vpop.f32.mrb[0].mxu0
        %1460 = vmatprep.mubr.bf16.mxu0 %v894
        %1461 = vmatmul.mubr.bf16.gmra.mrb[0].mxu0 %v893
        %v1462 = vpop.f32.mrb[0].mxu0
        %v1463 = vadd.f32 %v1302, %v1462
        %v1464 = vpop.f32.mrb[0].mxu0
        %v1465 = vpop.f32.mrb[0].mxu0
        %v1466 = vadd.f32 %v1305, %v1465
        %v1467 = vpop.f32.mrb[0].mxu0
        %1468 = vmatprep.mubr.bf16.mxu0 %v898
        %1469 = vmatmul.mubr.bf16.gmra.mrb[0].mxu0 %v897
        %v1470 = vpop.f32.mrb[0].mxu0
        %v1471 = vadd.f32 %v1310, %v1470
        %v1472 = vpop.f32.mrb[0].mxu0
        %v1473 = vpop.f32.mrb[0].mxu0
        %v1474 = vadd.f32 %v1313, %v1473
        %v1475 = vpop.f32.mrb[0].mxu0
        %1476 = vdwg.mxu0
        %v1477 = vadd.f32 %v483, %v1351
        %v1478 = vadd.f32 %v484, %v1354
        %v1479 = vadd.f32 %v485, %v1359
        %v1480 = vadd.f32 %v486, %v1362
        %v1481 = vadd.f32 %v487, %v1367
        %v1482 = vadd.f32 %v488, %v1370
        %v1483 = vadd.f32 %v489, %v1375
        %v1484 = vadd.f32 %v490, %v1378
        %v1485 = vadd.f32 %v491, %v1383
        %v1486 = vadd.f32 %v492, %v1386
        %v1487 = vadd.f32 %v493, %v1391
        %v1488 = vadd.f32 %v494, %v1394
        %v1489 = vadd.f32 %v495, %v1399
        %v1490 = vadd.f32 %v496, %v1402
        %v1491 = vadd.f32 %v497, %v1407
        %v1492 = vadd.f32 %v498, %v1410
        %v1493 = vadd.f32 %v499, %v1415
        %v1494 = vadd.f32 %v500, %v1418
        %v1495 = vadd.f32 %v501, %v1423
        %v1496 = vadd.f32 %v502, %v1426
        %v1497 = vadd.f32 %v503, %v1431
        %v1498 = vadd.f32 %v504, %v1434
        %v1499 = vadd.f32 %v505, %v1439
        %v1500 = vadd.f32 %v506, %v1442
        %v1501 = vadd.f32 %v507, %v1447
        %v1502 = vadd.f32 %v508, %v1450
        %v1503 = vadd.f32 %v509, %v1455
        %v1504 = vadd.f32 %v510, %v1458
        %v1505 = vadd.f32 %v511, %v1463
        %v1506 = vadd.f32 %v512, %v1466
        %v1507 = vadd.f32 %v513, %v1471
        %v1508 = vadd.f32 %v514, %v1474
        %1509 = vst [vmem:[#allocation2] sm:$0xff] %v1477
        %1510 = vst [vmem:[#allocation2 + $0x8] sm:$0xff] %v1478
        %1511 = vst [vmem:[#allocation2 + $0x10] sm:$0xff] %v1479
        %1512 = vst [vmem:[#allocation2 + $0x18] sm:$0xff] %v1480
        %1513 = vst [vmem:[#allocation2 + $0x20] sm:$0xff] %v1481
        %1514 = vst [vmem:[#allocation2 + $0x28] sm:$0xff] %v1482
        %1515 = vst [vmem:[#allocation2 + $0x30] sm:$0xff] %v1483
        %1516 = vst [vmem:[#allocation2 + $0x38] sm:$0xff] %v1484
        %1517 = vst [vmem:[#allocation2 + $0x40] sm:$0xff] %v1485
        %1518 = vst [vmem:[#allocation2 + $0x48] sm:$0xff] %v1486
        %1519 = vst [vmem:[#allocation2 + $0x50] sm:$0xff] %v1487
        %1520 = vst [vmem:[#allocation2 + $0x58] sm:$0xff] %v1488
        %1521 = vst [vmem:[#allocation2 + $0x60] sm:$0xff] %v1489
        %1522 = vst [vmem:[#allocation2 + $0x68] sm:$0xff] %v1490
        %1523 = vst [vmem:[#allocation2 + $0x70] sm:$0xff] %v1491
        %1524 = vst [vmem:[#allocation2 + $0x78] sm:$0xff] %v1492
        %1525 = vst [vmem:[#allocation2 + $0x80] sm:$0xff] %v1493
        %1526 = vst [vmem:[#allocation2 + $0x88] sm:$0xff] %v1494
        %1527 = vst [vmem:[#allocation2 + $0x90] sm:$0xff] %v1495
        %1528 = vst [vmem:[#allocation2 + $0x98] sm:$0xff] %v1496
        %1529 = vst [vmem:[#allocation2 + $0xa0] sm:$0xff] %v1497
        %1530 = vst [vmem:[#allocation2 + $0xa8] sm:$0xff] %v1498
        %1531 = vst [vmem:[#allocation2 + $0xb0] sm:$0xff] %v1499
        %1532 = vst [vmem:[#allocation2 + $0xb8] sm:$0xff] %v1500
        %1533 = vst [vmem:[#allocation2 + $0xc0] sm:$0xff] %v1501
        %1534 = vst [vmem:[#allocation2 + $0xc8] sm:$0xff] %v1502
        %1535 = vst [vmem:[#allocation2 + $0xd0] sm:$0xff] %v1503
        %1536 = vst [vmem:[#allocation2 + $0xd8] sm:$0xff] %v1504
        %1537 = vst [vmem:[#allocation2 + $0xe0] sm:$0xff] %v1505
        %1538 = vst [vmem:[#allocation2 + $0xe8] sm:$0xff] %v1506
        %1539 = vst [vmem:[#allocation2 + $0xf0] sm:$0xff] %v1507
        %1540 = vst [vmem:[#allocation2 + $0xf8] sm:$0xff] %v1508
        // Predicated region
        $region73: #{tpu_custom_call.1} parent=47 // pred_check
          %p1541 = pneg %p447
        $region74: #{tpu_custom_call.1} parent=47 // pred_check_branch
          %1543 = sbr.rel (%p1541) target = $region76
        $region75: #{tpu_custom_call.1} parent=47 // pred_region
          %v1544 = vld [vmem:[#allocation2] sm:$0xff]
          %v1545 = vld [vmem:[#allocation2 + $0x8] sm:$0xff]
          %v1546 = vld [vmem:[#allocation2 + $0x10] sm:$0xff]
          %v1547 = vld [vmem:[#allocation2 + $0x18] sm:$0xff]
          %v1548 = vld [vmem:[#allocation2 + $0x20] sm:$0xff]
          %v1549 = vld [vmem:[#allocation2 + $0x28] sm:$0xff]
          %v1550 = vld [vmem:[#allocation2 + $0x30] sm:$0xff]
          %v1551 = vld [vmem:[#allocation2 + $0x38] sm:$0xff]
          %v1552 = vld [vmem:[#allocation2 + $0x40] sm:$0xff]
          %v1553 = vld [vmem:[#allocation2 + $0x48] sm:$0xff]
          %v1554 = vld [vmem:[#allocation2 + $0x50] sm:$0xff]
          %v1555 = vld [vmem:[#allocation2 + $0x58] sm:$0xff]
          %v1556 = vld [vmem:[#allocation2 + $0x60] sm:$0xff]
          %v1557 = vld [vmem:[#allocation2 + $0x68] sm:$0xff]
          %v1558 = vld [vmem:[#allocation2 + $0x70] sm:$0xff]
          %v1559 = vld [vmem:[#allocation2 + $0x78] sm:$0xff]
          %v1560 = vld [vmem:[#allocation2 + $0x80] sm:$0xff]
          %v1561 = vld [vmem:[#allocation2 + $0x88] sm:$0xff]
          %v1562 = vld [vmem:[#allocation2 + $0x90] sm:$0xff]
          %v1563 = vld [vmem:[#allocation2 + $0x98] sm:$0xff]
          %v1564 = vld [vmem:[#allocation2 + $0xa0] sm:$0xff]
          %v1565 = vld [vmem:[#allocation2 + $0xa8] sm:$0xff]
          %v1566 = vld [vmem:[#allocation2 + $0xb0] sm:$0xff]
          %v1567 = vld [vmem:[#allocation2 + $0xb8] sm:$0xff]
          %v1568 = vld [vmem:[#allocation2 + $0xc0] sm:$0xff]
          %v1569 = vld [vmem:[#allocation2 + $0xc8] sm:$0xff]
          %v1570 = vld [vmem:[#allocation2 + $0xd0] sm:$0xff]
          %v1571 = vld [vmem:[#allocation2 + $0xd8] sm:$0xff]
          %v1572 = vld [vmem:[#allocation2 + $0xe0] sm:$0xff]
          %v1573 = vld [vmem:[#allocation2 + $0xe8] sm:$0xff]
          %v1574 = vld [vmem:[#allocation2 + $0xf0] sm:$0xff]
          %v1575 = vld [vmem:[#allocation2 + $0xf8] sm:$0xff]
          %v1576 = vpack.c.bf16 %v1545, %v1544
          %v1577 = vpack.c.bf16 %v1547, %v1546
          %v1578 = vpack.c.bf16 %v1549, %v1548
          %v1579 = vpack.c.bf16 %v1551, %v1550
          %v1580 = vpack.c.bf16 %v1553, %v1552
          %v1581 = vpack.c.bf16 %v1555, %v1554
          %v1582 = vpack.c.bf16 %v1557, %v1556
          %v1583 = vpack.c.bf16 %v1559, %v1558
          %v1584 = vpack.c.bf16 %v1561, %v1560
          %v1585 = vpack.c.bf16 %v1563, %v1562
          %v1586 = vpack.c.bf16 %v1565, %v1564
          %v1587 = vpack.c.bf16 %v1567, %v1566
          %v1588 = vpack.c.bf16 %v1569, %v1568
          %v1589 = vpack.c.bf16 %v1571, %v1570
          %v1590 = vpack.c.bf16 %v1573, %v1572
          %v1591 = vpack.c.bf16 %v1575, %v1574
          %v1592 = vld [vmem:[#allocation8] sm:$0xf]
          %v1593 = vld [vmem:[#allocation8 + $0x4] sm:$0xf]
          %v1594 = vld [vmem:[#allocation8 + $0x8] sm:$0xf]
          %v1595 = vld [vmem:[#allocation8 + $0xc] sm:$0xf]
          %v1596 = vld [vmem:[#allocation8 + $0x10] sm:$0xf]
          %v1597 = vld [vmem:[#allocation8 + $0x14] sm:$0xf]
          %v1598 = vld [vmem:[#allocation8 + $0x18] sm:$0xf]
          %v1599 = vld [vmem:[#allocation8 + $0x1c] sm:$0xf]
          %v1600 = vld [vmem:[#allocation8 + $0x20] sm:$0xf]
          %v1601 = vld [vmem:[#allocation8 + $0x24] sm:$0xf]
          %v1602 = vld [vmem:[#allocation8 + $0x28] sm:$0xf]
          %v1603 = vld [vmem:[#allocation8 + $0x2c] sm:$0xf]
          %v1604 = vld [vmem:[#allocation8 + $0x30] sm:$0xf]
          %v1605 = vld [vmem:[#allocation8 + $0x34] sm:$0xf]
          %v1606 = vld [vmem:[#allocation8 + $0x38] sm:$0xf]
          %v1607 = vld [vmem:[#allocation8 + $0x3c] sm:$0xf]
          %v1608 = vld [vmem:[%s3] sm:$0x1]
          %v1610 = vlaneseq
          %v1611 = vshrl.u32 %v1610, 7
          %v1612 = vsub.s32 0, %v1611
          %v1613 = vrot.slane %v1608, %v1612
          %v1631 = vunpack.c.l.b16 %v1592
          %v1632 = vunpack.c.l.b16 %v1593
          %v1633 = vunpack.c.l.b16 %v1594
          %v1634 = vunpack.c.l.b16 %v1595
          %v1635 = vunpack.c.l.b16 %v1596
          %v1636 = vunpack.c.l.b16 %v1597
          %v1637 = vunpack.c.l.b16 %v1598
          %v1638 = vunpack.c.l.b16 %v1599
          %v1639 = vunpack.c.l.b16 %v1600
          %v1640 = vunpack.c.l.b16 %v1601
          %v1641 = vunpack.c.l.b16 %v1602
          %v1642 = vunpack.c.l.b16 %v1603
          %v1643 = vunpack.c.l.b16 %v1604
          %v1644 = vunpack.c.l.b16 %v1605
          %v1645 = vunpack.c.l.b16 %v1606
          %v1646 = vunpack.c.l.b16 %v1607
          %v1647 = vpack.c.b16 %v1632, %v1631
          %v1648 = vpack.c.b16 %v1634, %v1633
          %v1649 = vpack.c.b16 %v1636, %v1635
          %v1650 = vpack.c.b16 %v1638, %v1637
          %v1651 = vpack.c.b16 %v1640, %v1639
          %v1652 = vpack.c.b16 %v1642, %v1641
          %v1653 = vpack.c.b16 %v1644, %v1643
          %v1654 = vpack.c.b16 %v1646, %v1645
          %1663 = vmatprep.subr.bf16.mxu0 0
          %1664 = vmatpush1.bf16.msra.mxu0 %v1647
          %1665 = vmatprep.subr.bf16.mxu0 0
          %1666 = vmatpush1.bf16.msra.mxu0 %v1648
          %1667 = vmatprep.subr.bf16.mxu0 0
          %1668 = vmatpush1.bf16.msra.mxu0 %v1649
          %1669 = vmatprep.subr.bf16.mxu0 0
          %1670 = vmatpush1.bf16.msra.mxu0 %v1650
          %1671 = vmatprep.subr.bf16.mxu0 0
          %1672 = vmatpush1.bf16.msra.mxu0 %v1651
          %1673 = vmatprep.subr.bf16.mxu0 0
          %1674 = vmatpush1.bf16.msra.mxu0 %v1652
          %1675 = vmatprep.subr.bf16.mxu0 0
          %1676 = vmatpush1.bf16.msra.mxu0 %v1653
          %1677 = vmatprep.subr.bf16.mxu0 0
          %1678 = vmatpush1.bf16.msra.mxu0 %v1654
          %1679 = vmatprep.subr.bf16.mxu0 0
          %1680 = vmatpush1.bf16.msra.mxu0 0
          %1681 = vmatprep.subr.bf16.mxu0 0
          %1682 = vmatpush1.bf16.msra.mxu0 0
          %1683 = vmatprep.subr.bf16.mxu0 0
          %1684 = vmatpush1.bf16.msra.mxu0 0
          %1685 = vmatprep.subr.bf16.mxu0 0
          %1686 = vmatpush1.bf16.msra.mxu0 0
          %1687 = vmatprep.subr.bf16.mxu0 0
          %1688 = vmatpush1.bf16.msra.mxu0 0
          %1689 = vmatprep.subr.bf16.mxu0 0
          %1690 = vmatpush1.bf16.msra.mxu0 0
          %1691 = vmatprep.subr.bf16.mxu0 0
          %1692 = vmatpush1.bf16.msra.mxu0 0
          %1693 = vmatprep.subr.bf16.mxu0 0
          %1694 = vmatpush1.bf16.msra.mxu0 0
          %1695 = vmatprep.mubr.bf16.mxu0 0
          %1696 = vmatmul.mubr.bf16.gmra.mrb[0].mxu0 %v1576
          %v1697 = vpop.f32.mrb[0].mxu0
          %v1698 = vadd.f32 %v1613, %v1697
          %v1699 = vpop.f32.mrb[0].mxu0
          %v1700 = vpop.f32.mrb[0].mxu0
          %v1701 = vadd.f32 %v1613, %v1700
          %v1702 = vpop.f32.mrb[0].mxu0
          %1703 = vmatprep.mubr.bf16.mxu0 0
          %1704 = vmatmul.mubr.bf16.gmra.mrb[0].mxu0 %v1577
          %v1705 = vpop.f32.mrb[0].mxu0
          %v1706 = vadd.f32 %v1613, %v1705
          %v1707 = vpop.f32.mrb[0].mxu0
          %v1708 = vpop.f32.mrb[0].mxu0
          %v1709 = vadd.f32 %v1613, %v1708
          %v1710 = vpop.f32.mrb[0].mxu0
          %1711 = vmatprep.mubr.bf16.mxu0 0
          %1712 = vmatmul.mubr.bf16.gmra.mrb[0].mxu0 %v1578
          %v1713 = vpop.f32.mrb[0].mxu0
          %v1714 = vadd.f32 %v1613, %v1713
          %v1715 = vpop.f32.mrb[0].mxu0
          %v1716 = vpop.f32.mrb[0].mxu0
          %v1717 = vadd.f32 %v1613, %v1716
          %v1718 = vpop.f32.mrb[0].mxu0
          %1719 = vmatprep.mubr.bf16.mxu0 0
          %1720 = vmatmul.mubr.bf16.gmra.mrb[0].mxu0 %v1579
          %v1721 = vpop.f32.mrb[0].mxu0
          %v1722 = vadd.f32 %v1613, %v1721
          %v1723 = vpop.f32.mrb[0].mxu0
          %v1724 = vpop.f32.mrb[0].mxu0
          %v1725 = vadd.f32 %v1613, %v1724
          %v1726 = vpop.f32.mrb[0].mxu0
          %1727 = vmatprep.mubr.bf16.mxu0 0
          %1728 = vmatmul.mubr.bf16.gmra.mrb[0].mxu0 %v1580
          %v1729 = vpop.f32.mrb[0].mxu0
          %v1730 = vadd.f32 %v1613, %v1729
          %v1731 = vpop.f32.mrb[0].mxu0
          %v1732 = vpop.f32.mrb[0].mxu0
          %v1733 = vadd.f32 %v1613, %v1732
          %v1734 = vpop.f32.mrb[0].mxu0
          %1735 = vmatprep.mubr.bf16.mxu0 0
          %1736 = vmatmul.mubr.bf16.gmra.mrb[0].mxu0 %v1581
          %v1737 = vpop.f32.mrb[0].mxu0
          %v1738 = vadd.f32 %v1613, %v1737
          %v1739 = vpop.f32.mrb[0].mxu0
          %v1740 = vpop.f32.mrb[0].mxu0
          %v1741 = vadd.f32 %v1613, %v1740
          %v1742 = vpop.f32.mrb[0].mxu0
          %1743 = vmatprep.mubr.bf16.mxu0 0
          %1744 = vmatmul.mubr.bf16.gmra.mrb[0].mxu0 %v1582
          %v1745 = vpop.f32.mrb[0].mxu0
          %v1746 = vadd.f32 %v1613, %v1745
          %v1747 = vpop.f32.mrb[0].mxu0
          %v1748 = vpop.f32.mrb[0].mxu0
          %v1749 = vadd.f32 %v1613, %v1748
          %v1750 = vpop.f32.mrb[0].mxu0
          %1751 = vmatprep.mubr.bf16.mxu0 0
          %1752 = vmatmul.mubr.bf16.gmra.mrb[0].mxu0 %v1583
          %v1753 = vpop.f32.mrb[0].mxu0
          %v1754 = vadd.f32 %v1613, %v1753
          %v1755 = vpop.f32.mrb[0].mxu0
          %v1756 = vpop.f32.mrb[0].mxu0
          %v1757 = vadd.f32 %v1613, %v1756
          %v1758 = vpop.f32.mrb[0].mxu0
          %1759 = vmatprep.mubr.bf16.mxu0 0
          %1760 = vmatmul.mubr.bf16.gmra.mrb[0].mxu0 %v1584
          %v1761 = vpop.f32.mrb[0].mxu0
          %v1762 = vadd.f32 %v1613, %v1761
          %v1763 = vpop.f32.mrb[0].mxu0
          %v1764 = vpop.f32.mrb[0].mxu0
          %v1765 = vadd.f32 %v1613, %v1764
          %v1766 = vpop.f32.mrb[0].mxu0
          %1767 = vmatprep.mubr.bf16.mxu0 0
          %1768 = vmatmul.mubr.bf16.gmra.mrb[0].mxu0 %v1585
          %v1769 = vpop.f32.mrb[0].mxu0
          %v1770 = vadd.f32 %v1613, %v1769
          %v1771 = vpop.f32.mrb[0].mxu0
          %v1772 = vpop.f32.mrb[0].mxu0
          %v1773 = vadd.f32 %v1613, %v1772
          %v1774 = vpop.f32.mrb[0].mxu0
          %1775 = vmatprep.mubr.bf16.mxu0 0
          %1776 = vmatmul.mubr.bf16.gmra.mrb[0].mxu0 %v1586
          %v1777 = vpop.f32.mrb[0].mxu0
          %v1778 = vadd.f32 %v1613, %v1777
          %v1779 = vpop.f32.mrb[0].mxu0
          %v1780 = vpop.f32.mrb[0].mxu0
          %v1781 = vadd.f32 %v1613, %v1780
          %v1782 = vpop.f32.mrb[0].mxu0
          %1783 = vmatprep.mubr.bf16.mxu0 0
          %1784 = vmatmul.mubr.bf16.gmra.mrb[0].mxu0 %v1587
          %v1785 = vpop.f32.mrb[0].mxu0
          %v1786 = vadd.f32 %v1613, %v1785
          %v1787 = vpop.f32.mrb[0].mxu0
          %v1788 = vpop.f32.mrb[0].mxu0
          %v1789 = vadd.f32 %v1613, %v1788
          %v1790 = vpop.f32.mrb[0].mxu0
          %1791 = vmatprep.mubr.bf16.mxu0 0
          %1792 = vmatmul.mubr.bf16.gmra.mrb[0].mxu0 %v1588
          %v1793 = vpop.f32.mrb[0].mxu0
          %v1794 = vadd.f32 %v1613, %v1793
          %v1795 = vpop.f32.mrb[0].mxu0
          %v1796 = vpop.f32.mrb[0].mxu0
          %v1797 = vadd.f32 %v1613, %v1796
          %v1798 = vpop.f32.mrb[0].mxu0
          %1799 = vmatprep.mubr.bf16.mxu0 0
          %1800 = vmatmul.mubr.bf16.gmra.mrb[0].mxu0 %v1589
          %v1801 = vpop.f32.mrb[0].mxu0
          %v1802 = vadd.f32 %v1613, %v1801
          %v1803 = vpop.f32.mrb[0].mxu0
          %v1804 = vpop.f32.mrb[0].mxu0
          %v1805 = vadd.f32 %v1613, %v1804
          %v1806 = vpop.f32.mrb[0].mxu0
          %1807 = vmatprep.mubr.bf16.mxu0 0
          %1808 = vmatmul.mubr.bf16.gmra.mrb[0].mxu0 %v1590
          %v1809 = vpop.f32.mrb[0].mxu0
          %v1810 = vadd.f32 %v1613, %v1809
          %v1811 = vpop.f32.mrb[0].mxu0
          %v1812 = vpop.f32.mrb[0].mxu0
          %v1813 = vadd.f32 %v1613, %v1812
          %v1814 = vpop.f32.mrb[0].mxu0
          %1815 = vmatprep.mubr.bf16.mxu0 0
          %1816 = vmatmul.mubr.bf16.gmra.mrb[0].mxu0 %v1591
          %v1817 = vpop.f32.mrb[0].mxu0
          %v1818 = vadd.f32 %v1613, %v1817
          %v1819 = vpop.f32.mrb[0].mxu0
          %v1820 = vpop.f32.mrb[0].mxu0
          %v1821 = vadd.f32 %v1613, %v1820
          %v1822 = vpop.f32.mrb[0].mxu0
          %1823 = vdwg.mxu0
          %v1824 = vmax.f32 %v1698, 0.0
          %v1825 = vmax.f32 %v1701, 0.0
          %v1826 = vmax.f32 %v1706, 0.0
          %v1827 = vmax.f32 %v1709, 0.0
          %v1828 = vmax.f32 %v1714, 0.0
          %v1829 = vmax.f32 %v1717, 0.0
          %v1830 = vmax.f32 %v1722, 0.0
          %v1831 = vmax.f32 %v1725, 0.0
          %v1832 = vmax.f32 %v1730, 0.0
          %v1833 = vmax.f32 %v1733, 0.0
          %v1834 = vmax.f32 %v1738, 0.0
          %v1835 = vmax.f32 %v1741, 0.0
          %v1836 = vmax.f32 %v1746, 0.0
          %v1837 = vmax.f32 %v1749, 0.0
          %v1838 = vmax.f32 %v1754, 0.0
          %v1839 = vmax.f32 %v1757, 0.0
          %v1840 = vmax.f32 %v1762, 0.0
          %v1841 = vmax.f32 %v1765, 0.0
          %v1842 = vmax.f32 %v1770, 0.0
          %v1843 = vmax.f32 %v1773, 0.0
          %v1844 = vmax.f32 %v1778, 0.0
          %v1845 = vmax.f32 %v1781, 0.0
          %v1846 = vmax.f32 %v1786, 0.0
          %v1847 = vmax.f32 %v1789, 0.0
          %v1848 = vmax.f32 %v1794, 0.0
          %v1849 = vmax.f32 %v1797, 0.0
          %v1850 = vmax.f32 %v1802, 0.0
          %v1851 = vmax.f32 %v1805, 0.0
          %v1852 = vmax.f32 %v1810, 0.0
          %v1853 = vmax.f32 %v1813, 0.0
          %v1854 = vmax.f32 %v1818, 0.0
          %v1855 = vmax.f32 %v1821, 0.0
          %v1856 = vpack.c.bf16 %v1825, %v1824
          %v1857 = vpack.c.bf16 %v1827, %v1826
          %v1858 = vpack.c.bf16 %v1829, %v1828
          %v1859 = vpack.c.bf16 %v1831, %v1830
          %v1860 = vpack.c.bf16 %v1833, %v1832
          %v1861 = vpack.c.bf16 %v1835, %v1834
          %v1862 = vpack.c.bf16 %v1837, %v1836
          %v1863 = vpack.c.bf16 %v1839, %v1838
          %v1864 = vpack.c.bf16 %v1841, %v1840
          %v1865 = vpack.c.bf16 %v1843, %v1842
          %v1866 = vpack.c.bf16 %v1845, %v1844
          %v1867 = vpack.c.bf16 %v1847, %v1846
          %v1868 = vpack.c.bf16 %v1849, %v1848
          %v1869 = vpack.c.bf16 %v1851, %v1850
          %v1870 = vpack.c.bf16 %v1853, %v1852
          %v1871 = vpack.c.bf16 %v1855, %v1854
          %v1872 = vld [vmem:[#allocation9] sm:$0xf]
          %v1873 = vld [vmem:[#allocation9 + $0x4] sm:$0xf]
          %v1874 = vld [vmem:[#allocation9 + $0x8] sm:$0xf]
          %v1875 = vld [vmem:[#allocation9 + $0xc] sm:$0xf]
          %v1876 = vld [vmem:[#allocation9 + $0x10] sm:$0xf]
          %v1877 = vld [vmem:[#allocation9 + $0x14] sm:$0xf]
          %v1878 = vld [vmem:[#allocation9 + $0x18] sm:$0xf]
          %v1879 = vld [vmem:[#allocation9 + $0x1c] sm:$0xf]
          %v1880 = vld [vmem:[#allocation9 + $0x20] sm:$0xf]
          %v1881 = vld [vmem:[#allocation9 + $0x24] sm:$0xf]
          %v1882 = vld [vmem:[#allocation9 + $0x28] sm:$0xf]
          %v1883 = vld [vmem:[#allocation9 + $0x2c] sm:$0xf]
          %v1884 = vld [vmem:[#allocation9 + $0x30] sm:$0xf]
          %v1885 = vld [vmem:[#allocation9 + $0x34] sm:$0xf]
          %v1886 = vld [vmem:[#allocation9 + $0x38] sm:$0xf]
          %v1887 = vld [vmem:[#allocation9 + $0x3c] sm:$0xf]
          %v1888 = vld [vmem:[%s5] sm:$0x1]
          %v1890 = vlaneseq
          %v1891 = vshrl.u32 %v1890, 7
          %v1892 = vsub.s32 0, %v1891
          %v1893 = vrot.slane %v1888, %v1892
          %v1911 = vunpack.c.l.b16 %v1872
          %v1912 = vunpack.c.l.b16 %v1873
          %v1913 = vunpack.c.l.b16 %v1874
          %v1914 = vunpack.c.l.b16 %v1875
          %v1915 = vunpack.c.l.b16 %v1876
          %v1916 = vunpack.c.l.b16 %v1877
          %v1917 = vunpack.c.l.b16 %v1878
          %v1918 = vunpack.c.l.b16 %v1879
          %v1919 = vunpack.c.l.b16 %v1880
          %v1920 = vunpack.c.l.b16 %v1881
          %v1921 = vunpack.c.l.b16 %v1882
          %v1922 = vunpack.c.l.b16 %v1883
          %v1923 = vunpack.c.l.b16 %v1884
          %v1924 = vunpack.c.l.b16 %v1885
          %v1925 = vunpack.c.l.b16 %v1886
          %v1926 = vunpack.c.l.b16 %v1887
          %v1927 = vpack.c.b16 %v1912, %v1911
          %v1928 = vpack.c.b16 %v1914, %v1913
          %v1929 = vpack.c.b16 %v1916, %v1915
          %v1930 = vpack.c.b16 %v1918, %v1917
          %v1931 = vpack.c.b16 %v1920, %v1919
          %v1932 = vpack.c.b16 %v1922, %v1921
          %v1933 = vpack.c.b16 %v1924, %v1923
          %v1934 = vpack.c.b16 %v1926, %v1925
          %1943 = vmatprep.subr.bf16.mxu0 0
          %1944 = vmatpush1.bf16.msra.mxu0 %v1927
          %1945 = vmatprep.subr.bf16.mxu0 0
          %1946 = vmatpush1.bf16.msra.mxu0 %v1928
          %1947 = vmatprep.subr.bf16.mxu0 0
          %1948 = vmatpush1.bf16.msra.mxu0 %v1929
          %1949 = vmatprep.subr.bf16.mxu0 0
          %1950 = vmatpush1.bf16.msra.mxu0 %v1930
          %1951 = vmatprep.subr.bf16.mxu0 0
          %1952 = vmatpush1.bf16.msra.mxu0 %v1931
          %1953 = vmatprep.subr.bf16.mxu0 0
          %1954 = vmatpush1.bf16.msra.mxu0 %v1932
          %1955 = vmatprep.subr.bf16.mxu0 0
          %1956 = vmatpush1.bf16.msra.mxu0 %v1933
          %1957 = vmatprep.subr.bf16.mxu0 0
          %1958 = vmatpush1.bf16.msra.mxu0 %v1934
          %1959 = vmatprep.subr.bf16.mxu0 0
          %1960 = vmatpush1.bf16.msra.mxu0 0
          %1961 = vmatprep.subr.bf16.mxu0 0
          %1962 = vmatpush1.bf16.msra.mxu0 0
          %1963 = vmatprep.subr.bf16.mxu0 0
          %1964 = vmatpush1.bf16.msra.mxu0 0
          %1965 = vmatprep.subr.bf16.mxu0 0
          %1966 = vmatpush1.bf16.msra.mxu0 0
          %1967 = vmatprep.subr.bf16.mxu0 0
          %1968 = vmatpush1.bf16.msra.mxu0 0
          %1969 = vmatprep.subr.bf16.mxu0 0
          %1970 = vmatpush1.bf16.msra.mxu0 0
          %1971 = vmatprep.subr.bf16.mxu0 0
          %1972 = vmatpush1.bf16.msra.mxu0 0
          %1973 = vmatprep.subr.bf16.mxu0 0
          %1974 = vmatpush1.bf16.msra.mxu0 0
          %1975 = vmatprep.mubr.bf16.mxu0 0
          %1976 = vmatmul.mubr.bf16.gmra.mrb[0].mxu0 %v1856
          %v1977 = vpop.f32.mrb[0].mxu0
          %v1978 = vadd.f32 %v1893, %v1977
          %v1979 = vpop.f32.mrb[0].mxu0
          %v1980 = vpop.f32.mrb[0].mxu0
          %v1981 = vadd.f32 %v1893, %v1980
          %v1982 = vpop.f32.mrb[0].mxu0
          %1983 = vmatprep.mubr.bf16.mxu0 0
          %1984 = vmatmul.mubr.bf16.gmra.mrb[0].mxu0 %v1857
          %v1985 = vpop.f32.mrb[0].mxu0
          %v1986 = vadd.f32 %v1893, %v1985
          %v1987 = vpop.f32.mrb[0].mxu0
          %v1988 = vpop.f32.mrb[0].mxu0
          %v1989 = vadd.f32 %v1893, %v1988
          %v1990 = vpop.f32.mrb[0].mxu0
          %1991 = vmatprep.mubr.bf16.mxu0 0
          %1992 = vmatmul.mubr.bf16.gmra.mrb[0].mxu0 %v1858
          %v1993 = vpop.f32.mrb[0].mxu0
          %v1994 = vadd.f32 %v1893, %v1993
          %v1995 = vpop.f32.mrb[0].mxu0
          %v1996 = vpop.f32.mrb[0].mxu0
          %v1997 = vadd.f32 %v1893, %v1996
          %v1998 = vpop.f32.mrb[0].mxu0
          %1999 = vmatprep.mubr.bf16.mxu0 0
          %2000 = vmatmul.mubr.bf16.gmra.mrb[0].mxu0 %v1859
          %v2001 = vpop.f32.mrb[0].mxu0
          %v2002 = vadd.f32 %v1893, %v2001
          %v2003 = vpop.f32.mrb[0].mxu0
          %v2004 = vpop.f32.mrb[0].mxu0
          %v2005 = vadd.f32 %v1893, %v2004
          %v2006 = vpop.f32.mrb[0].mxu0
          %2007 = vmatprep.mubr.bf16.mxu0 0
          %2008 = vmatmul.mubr.bf16.gmra.mrb[0].mxu0 %v1860
          %v2009 = vpop.f32.mrb[0].mxu0
          %v2010 = vadd.f32 %v1893, %v2009
          %v2011 = vpop.f32.mrb[0].mxu0
          %v2012 = vpop.f32.mrb[0].mxu0
          %v2013 = vadd.f32 %v1893, %v2012
          %v2014 = vpop.f32.mrb[0].mxu0
          %2015 = vmatprep.mubr.bf16.mxu0 0
          %2016 = vmatmul.mubr.bf16.gmra.mrb[0].mxu0 %v1861
          %v2017 = vpop.f32.mrb[0].mxu0
          %v2018 = vadd.f32 %v1893, %v2017
          %v2019 = vpop.f32.mrb[0].mxu0
          %v2020 = vpop.f32.mrb[0].mxu0
          %v2021 = vadd.f32 %v1893, %v2020
          %v2022 = vpop.f32.mrb[0].mxu0
          %2023 = vmatprep.mubr.bf16.mxu0 0
          %2024 = vmatmul.mubr.bf16.gmra.mrb[0].mxu0 %v1862
          %v2025 = vpop.f32.mrb[0].mxu0
          %v2026 = vadd.f32 %v1893, %v2025
          %v2027 = vpop.f32.mrb[0].mxu0
          %v2028 = vpop.f32.mrb[0].mxu0
          %v2029 = vadd.f32 %v1893, %v2028
          %v2030 = vpop.f32.mrb[0].mxu0
          %2031 = vmatprep.mubr.bf16.mxu0 0
          %2032 = vmatmul.mubr.bf16.gmra.mrb[0].mxu0 %v1863
          %v2033 = vpop.f32.mrb[0].mxu0
          %v2034 = vadd.f32 %v1893, %v2033
          %v2035 = vpop.f32.mrb[0].mxu0
          %v2036 = vpop.f32.mrb[0].mxu0
          %v2037 = vadd.f32 %v1893, %v2036
          %v2038 = vpop.f32.mrb[0].mxu0
          %2039 = vmatprep.mubr.bf16.mxu0 0
          %2040 = vmatmul.mubr.bf16.gmra.mrb[0].mxu0 %v1864
          %v2041 = vpop.f32.mrb[0].mxu0
          %v2042 = vadd.f32 %v1893, %v2041
          %v2043 = vpop.f32.mrb[0].mxu0
          %v2044 = vpop.f32.mrb[0].mxu0
          %v2045 = vadd.f32 %v1893, %v2044
          %v2046 = vpop.f32.mrb[0].mxu0
          %2047 = vmatprep.mubr.bf16.mxu0 0
          %2048 = vmatmul.mubr.bf16.gmra.mrb[0].mxu0 %v1865
          %v2049 = vpop.f32.mrb[0].mxu0
          %v2050 = vadd.f32 %v1893, %v2049
          %v2051 = vpop.f32.mrb[0].mxu0
          %v2052 = vpop.f32.mrb[0].mxu0
          %v2053 = vadd.f32 %v1893, %v2052
          %v2054 = vpop.f32.mrb[0].mxu0
          %2055 = vmatprep.mubr.bf16.mxu0 0
          %2056 = vmatmul.mubr.bf16.gmra.mrb[0].mxu0 %v1866
          %v2057 = vpop.f32.mrb[0].mxu0
          %v2058 = vadd.f32 %v1893, %v2057
          %v2059 = vpop.f32.mrb[0].mxu0
          %v2060 = vpop.f32.mrb[0].mxu0
          %v2061 = vadd.f32 %v1893, %v2060
          %v2062 = vpop.f32.mrb[0].mxu0
          %2063 = vmatprep.mubr.bf16.mxu0 0
          %2064 = vmatmul.mubr.bf16.gmra.mrb[0].mxu0 %v1867
          %v2065 = vpop.f32.mrb[0].mxu0
          %v2066 = vadd.f32 %v1893, %v2065
          %v2067 = vpop.f32.mrb[0].mxu0
          %v2068 = vpop.f32.mrb[0].mxu0
          %v2069 = vadd.f32 %v1893, %v2068
          %v2070 = vpop.f32.mrb[0].mxu0
          %2071 = vmatprep.mubr.bf16.mxu0 0
          %2072 = vmatmul.mubr.bf16.gmra.mrb[0].mxu0 %v1868
          %v2073 = vpop.f32.mrb[0].mxu0
          %v2074 = vadd.f32 %v1893, %v2073
          %v2075 = vpop.f32.mrb[0].mxu0
          %v2076 = vpop.f32.mrb[0].mxu0
          %v2077 = vadd.f32 %v1893, %v2076
          %v2078 = vpop.f32.mrb[0].mxu0
          %2079 = vmatprep.mubr.bf16.mxu0 0
          %2080 = vmatmul.mubr.bf16.gmra.mrb[0].mxu0 %v1869
          %v2081 = vpop.f32.mrb[0].mxu0
          %v2082 = vadd.f32 %v1893, %v2081
          %v2083 = vpop.f32.mrb[0].mxu0
          %v2084 = vpop.f32.mrb[0].mxu0
          %v2085 = vadd.f32 %v1893, %v2084
          %v2086 = vpop.f32.mrb[0].mxu0
          %2087 = vmatprep.mubr.bf16.mxu0 0
          %2088 = vmatmul.mubr.bf16.gmra.mrb[0].mxu0 %v1870
          %v2089 = vpop.f32.mrb[0].mxu0
          %v2090 = vadd.f32 %v1893, %v2089
          %v2091 = vpop.f32.mrb[0].mxu0
          %v2092 = vpop.f32.mrb[0].mxu0
          %v2093 = vadd.f32 %v1893, %v2092
          %v2094 = vpop.f32.mrb[0].mxu0
          %2095 = vmatprep.mubr.bf16.mxu0 0
          %2096 = vmatmul.mubr.bf16.gmra.mrb[0].mxu0 %v1871
          %v2097 = vpop.f32.mrb[0].mxu0
          %v2098 = vadd.f32 %v1893, %v2097
          %v2099 = vpop.f32.mrb[0].mxu0
          %v2100 = vpop.f32.mrb[0].mxu0
          %v2101 = vadd.f32 %v1893, %v2100
          %v2102 = vpop.f32.mrb[0].mxu0
          %2103 = vdwg.mxu0
          %v2104 = vmax.f32 %v1978, 0.0
          %v2105 = vmax.f32 %v1981, 0.0
          %v2106 = vmax.f32 %v1986, 0.0
          %v2107 = vmax.f32 %v1989, 0.0
          %v2108 = vmax.f32 %v1994, 0.0
          %v2109 = vmax.f32 %v1997, 0.0
          %v2110 = vmax.f32 %v2002, 0.0
          %v2111 = vmax.f32 %v2005, 0.0
          %v2112 = vmax.f32 %v2010, 0.0
          %v2113 = vmax.f32 %v2013, 0.0
          %v2114 = vmax.f32 %v2018, 0.0
          %v2115 = vmax.f32 %v2021, 0.0
          %v2116 = vmax.f32 %v2026, 0.0
          %v2117 = vmax.f32 %v2029, 0.0
          %v2118 = vmax.f32 %v2034, 0.0
          %v2119 = vmax.f32 %v2037, 0.0
          %v2120 = vmax.f32 %v2042, 0.0
          %v2121 = vmax.f32 %v2045, 0.0
          %v2122 = vmax.f32 %v2050, 0.0
          %v2123 = vmax.f32 %v2053, 0.0
          %v2124 = vmax.f32 %v2058, 0.0
          %v2125 = vmax.f32 %v2061, 0.0
          %v2126 = vmax.f32 %v2066, 0.0
          %v2127 = vmax.f32 %v2069, 0.0
          %v2128 = vmax.f32 %v2074, 0.0
          %v2129 = vmax.f32 %v2077, 0.0
          %v2130 = vmax.f32 %v2082, 0.0
          %v2131 = vmax.f32 %v2085, 0.0
          %v2132 = vmax.f32 %v2090, 0.0
          %v2133 = vmax.f32 %v2093, 0.0
          %v2134 = vmax.f32 %v2098, 0.0
          %v2135 = vmax.f32 %v2101, 0.0
          %v2136 = vpack.c.bf16 %v2105, %v2104
          %v2137 = vpack.c.bf16 %v2107, %v2106
          %v2138 = vpack.c.bf16 %v2109, %v2108
          %v2139 = vpack.c.bf16 %v2111, %v2110
          %v2140 = vpack.c.bf16 %v2113, %v2112
          %v2141 = vpack.c.bf16 %v2115, %v2114
          %v2142 = vpack.c.bf16 %v2117, %v2116
          %v2143 = vpack.c.bf16 %v2119, %v2118
          %v2144 = vpack.c.bf16 %v2121, %v2120
          %v2145 = vpack.c.bf16 %v2123, %v2122
          %v2146 = vpack.c.bf16 %v2125, %v2124
          %v2147 = vpack.c.bf16 %v2127, %v2126
          %v2148 = vpack.c.bf16 %v2129, %v2128
          %v2149 = vpack.c.bf16 %v2131, %v2130
          %v2150 = vpack.c.bf16 %v2133, %v2132
          %v2151 = vpack.c.bf16 %v2135, %v2134
          %v2168 = vunpack.c.l.b16 %v2136
          %v2169 = vunpack.c.h.b16 %v2136
          %v2170 = vunpack.c.l.b16 %v2137
          %v2171 = vunpack.c.h.b16 %v2137
          %v2172 = vunpack.c.l.b16 %v2138
          %v2173 = vunpack.c.h.b16 %v2138
          %v2174 = vunpack.c.l.b16 %v2139
          %v2175 = vunpack.c.h.b16 %v2139
          %v2176 = vunpack.c.l.b16 %v2140
          %v2177 = vunpack.c.h.b16 %v2140
          %v2178 = vunpack.c.l.b16 %v2141
          %v2179 = vunpack.c.h.b16 %v2141
          %v2180 = vunpack.c.l.b16 %v2142
          %v2181 = vunpack.c.h.b16 %v2142
          %v2182 = vunpack.c.l.b16 %v2143
          %v2183 = vunpack.c.h.b16 %v2143
          %v2184 = vunpack.c.l.b16 %v2144
          %v2185 = vunpack.c.h.b16 %v2144
          %v2186 = vunpack.c.l.b16 %v2145
          %v2187 = vunpack.c.h.b16 %v2145
          %v2188 = vunpack.c.l.b16 %v2146
          %v2189 = vunpack.c.h.b16 %v2146
          %v2190 = vunpack.c.l.b16 %v2147
          %v2191 = vunpack.c.h.b16 %v2147
          %v2192 = vunpack.c.l.b16 %v2148
          %v2193 = vunpack.c.h.b16 %v2148
          %v2194 = vunpack.c.l.b16 %v2149
          %v2195 = vunpack.c.h.b16 %v2149
          %v2196 = vunpack.c.l.b16 %v2150
          %v2197 = vunpack.c.h.b16 %v2150
          %v2198 = vunpack.c.l.b16 %v2151
          %v2199 = vunpack.c.h.b16 %v2151
          %v2200 = vpack.c.b16 %v2168, %v2168
          %v2201 = vpack.c.b16 %v2169, %v2169
          %v2202 = vpack.c.b16 %v2170, %v2170
          %v2203 = vpack.c.b16 %v2171, %v2171
          %v2204 = vpack.c.b16 %v2172, %v2172
          %v2205 = vpack.c.b16 %v2173, %v2173
          %v2206 = vpack.c.b16 %v2174, %v2174
          %v2207 = vpack.c.b16 %v2175, %v2175
          %v2208 = vpack.c.b16 %v2176, %v2176
          %v2209 = vpack.c.b16 %v2177, %v2177
          %v2210 = vpack.c.b16 %v2178, %v2178
          %v2211 = vpack.c.b16 %v2179, %v2179
          %v2212 = vpack.c.b16 %v2180, %v2180
          %v2213 = vpack.c.b16 %v2181, %v2181
          %v2214 = vpack.c.b16 %v2182, %v2182
          %v2215 = vpack.c.b16 %v2183, %v2183
          %v2216 = vpack.c.b16 %v2184, %v2184
          %v2217 = vpack.c.b16 %v2185, %v2185
          %v2218 = vpack.c.b16 %v2186, %v2186
          %v2219 = vpack.c.b16 %v2187, %v2187
          %v2220 = vpack.c.b16 %v2188, %v2188
          %v2221 = vpack.c.b16 %v2189, %v2189
          %v2222 = vpack.c.b16 %v2190, %v2190
          %v2223 = vpack.c.b16 %v2191, %v2191
          %v2224 = vpack.c.b16 %v2192, %v2192
          %v2225 = vpack.c.b16 %v2193, %v2193
          %v2226 = vpack.c.b16 %v2194, %v2194
          %v2227 = vpack.c.b16 %v2195, %v2195
          %v2228 = vpack.c.b16 %v2196, %v2196
          %v2229 = vpack.c.b16 %v2197, %v2197
          %v2230 = vpack.c.b16 %v2198, %v2198
          %v2231 = vpack.c.b16 %v2199, %v2199
          %2264 = vst [vmem:[%s433] sm:$0xf] %v2200
          %2265 = vst [vmem:[%s433 + $0x4] sm:$0xf] %v2201
          %2266 = vst [vmem:[%s433 + $0x8] sm:$0xf] %v2202
          %2267 = vst [vmem:[%s433 + $0xc] sm:$0xf] %v2203
          %2268 = vst [vmem:[%s433 + $0x10] sm:$0xf] %v2204
          %2269 = vst [vmem:[%s433 + $0x14] sm:$0xf] %v2205
          %2270 = vst [vmem:[%s433 + $0x18] sm:$0xf] %v2206
          %2271 = vst [vmem:[%s433 + $0x1c] sm:$0xf] %v2207
          %2272 = vst [vmem:[%s433 + $0x20] sm:$0xf] %v2208
          %2273 = vst [vmem:[%s433 + $0x24] sm:$0xf] %v2209
          %2274 = vst [vmem:[%s433 + $0x28] sm:$0xf] %v2210
          %2275 = vst [vmem:[%s433 + $0x2c] sm:$0xf] %v2211
          %2276 = vst [vmem:[%s433 + $0x30] sm:$0xf] %v2212
          %2277 = vst [vmem:[%s433 + $0x34] sm:$0xf] %v2213
          %2278 = vst [vmem:[%s433 + $0x38] sm:$0xf] %v2214
          %2279 = vst [vmem:[%s433 + $0x3c] sm:$0xf] %v2215
          %2280 = vst [vmem:[%s433 + $0x40] sm:$0xf] %v2216
          %2281 = vst [vmem:[%s433 + $0x44] sm:$0xf] %v2217
          %2282 = vst [vmem:[%s433 + $0x48] sm:$0xf] %v2218
          %2283 = vst [vmem:[%s433 + $0x4c] sm:$0xf] %v2219
          %2284 = vst [vmem:[%s433 + $0x50] sm:$0xf] %v2220
          %2285 = vst [vmem:[%s433 + $0x54] sm:$0xf] %v2221
          %2286 = vst [vmem:[%s433 + $0x58] sm:$0xf] %v2222
          %2287 = vst [vmem:[%s433 + $0x5c] sm:$0xf] %v2223
          %2288 = vst [vmem:[%s433 + $0x60] sm:$0xf] %v2224
          %2289 = vst [vmem:[%s433 + $0x64] sm:$0xf] %v2225
          %2290 = vst [vmem:[%s433 + $0x68] sm:$0xf] %v2226
          %2291 = vst [vmem:[%s433 + $0x6c] sm:$0xf] %v2227
          %2292 = vst [vmem:[%s433 + $0x70] sm:$0xf] %v2228
          %2293 = vst [vmem:[%s433 + $0x74] sm:$0xf] %v2229
          %2294 = vst [vmem:[%s433 + $0x78] sm:$0xf] %v2230
          %2295 = vst [vmem:[%s433 + $0x7c] sm:$0xf] %v2231
          %v2296 = vld [vmem:[%s398] sm:$0xff]
          %v2297 = vld [vmem:[%s398 + $0x8] sm:$0xff]
          %v2300 = vunpack.c.l.b16 %v2296
          %v2301 = vunpack.c.h.b16 %v2296
          %v2302 = vunpack.c.l.b16 %v2297
          %v2303 = vunpack.c.h.b16 %v2297
          %v2304 = vpack.c.b16 %v2302, %v2300
          %v2305 = vpack.c.b16 %v2303, %v2301
          %2308 = vmatprep.subr.bf16.mxu0 0
          %2309 = vmatpush1.bf16.msra.mxu0 %v2136
          %2310 = vmatprep.subr.bf16.mxu0 0
          %2311 = vmatpush1.bf16.msra.mxu0 %v2137
          %2312 = vmatprep.subr.bf16.mxu0 0
          %2313 = vmatpush1.bf16.msra.mxu0 %v2138
          %2314 = vmatprep.subr.bf16.mxu0 0
          %2315 = vmatpush1.bf16.msra.mxu0 %v2139
          %2316 = vmatprep.subr.bf16.mxu0 0
          %2317 = vmatpush1.bf16.msra.mxu0 %v2140
          %2318 = vmatprep.subr.bf16.mxu0 0
          %2319 = vmatpush1.bf16.msra.mxu0 %v2141
          %2320 = vmatprep.subr.bf16.mxu0 0
          %2321 = vmatpush1.bf16.msra.mxu0 %v2142
          %2322 = vmatprep.subr.bf16.mxu0 0
          %2323 = vmatpush1.bf16.msra.mxu0 %v2143
          %2324 = vmatprep.subr.bf16.mxu0 0
          %2325 = vmatpush1.bf16.msra.mxu0 %v2144
          %2326 = vmatprep.subr.bf16.mxu0 0
          %2327 = vmatpush1.bf16.msra.mxu0 %v2145
          %2328 = vmatprep.subr.bf16.mxu0 0
          %2329 = vmatpush1.bf16.msra.mxu0 %v2146
          %2330 = vmatprep.subr.bf16.mxu0 0
          %2331 = vmatpush1.bf16.msra.mxu0 %v2147
          %2332 = vmatprep.subr.bf16.mxu0 0
          %2333 = vmatpush1.bf16.msra.mxu0 %v2148
          %2334 = vmatprep.subr.bf16.mxu0 0
          %2335 = vmatpush1.bf16.msra.mxu0 %v2149
          %2336 = vmatprep.subr.bf16.mxu0 0
          %2337 = vmatpush1.bf16.msra.mxu0 %v2150
          %2338 = vmatprep.subr.bf16.mxu0 0
          %2339 = vmatpush1.bf16.msra.mxu0 %v2151
          %2340 = vmatprep.mubr.bf16.mxu0 %v2305
          %2341 = vmatmul.mubr.bf16.gmra.mrb[0].mxu0 %v2304
          %v2342 = vpop.f32.mrb[0].mxu0
          %v2343 = vadd.f32 0.0, %v2342
          %v2344 = vpop.f32.mrb[0].mxu0
          %v2345 = vpop.f32.mrb[0].mxu0
          %v2346 = vadd.f32 0.0, %v2345
          %v2347 = vpop.f32.mrb[0].mxu0
          %2348 = vdwg.mxu0
          %2349 = vst [vmem:[%s440] sm:$0xff] %v2343
          %2350 = vst [vmem:[%s440 + $0x8] sm:$0xff] %v2346
        $region76: #{tpu_custom_call.1} parent=47 // pred_fallthru
          _
        %s2351 = sand.u32 %s215, 1
        %s2352 = scalar_lea.sflag [#allocation5], %s2351
        %s2353 = sand.u32 %s215, 1
        %s2354 = smul.addr %s2353, 128
        %s2355 = scalar_lea.vmem [#allocation12], %s2354
        %s2356 = sand.u32 %s241, 1
        %s2357 = scalar_lea.sflag [#allocation14], %s2356
        %s2358 = sand.u32 %s241, 1
        %s2359 = smul.addr %s2358, 16
        %s2360 = scalar_lea.vmem [#allocation13], %s2359
        // Predicated region
        $region77: #{tpu_custom_call.1} parent=47 // pred_check
          %p2361 = pneg %p225
        $region78: #{tpu_custom_call.1} parent=47 // pred_check_branch
          %2363 = sbr.rel (%p2361) target = $region80
        $region79: #{tpu_custom_call.1} parent=47 // pred_region
          %s2364 = smul.u32 32, %s35
          %s2366 = ssub.s32 2048, 2048
          %2367 = vsyncadd %s2352, %s2366
          %s2368 = smul.addr %s2364, 64
          %s2369 = scalar_lea.hbm %s7, %s2368
          %s2370 = sshll.u32 %s2355, 4
          %s2371 = int_to_ptr.vmem [resolvable:$true] %s2370
          %2376 = dma.vmem_to_hbm [thread:$0]  %s2371, 2048, %s2369, %s2352, 64, 64, 4
        $region80: #{tpu_custom_call.1} parent=47 // pred_fallthru
          _
        // Predicated region
        $region81: #{tpu_custom_call.1} parent=47 // pred_check
          %p2377 = pneg %p251
        $region82: #{tpu_custom_call.1} parent=47 // pred_check_branch
          %2379 = sbr.rel (%p2377) target = $region84
        $region83: #{tpu_custom_call.1} parent=47 // pred_region
          %s2381 = ssub.s32 256, 256
          %2382 = vsyncadd %s2357, %s2381
          %s2383 = smul.addr %s35, 2
          %s2384 = smul.addr %s2383, 128
          %s2385 = scalar_lea.hbm %s8, %s2384
          %s2386 = sshll.u32 %s2360, 4
          %s2387 = int_to_ptr.vmem [resolvable:$true] %s2386
          %2392 = dma.vmem_to_hbm [thread:$0]  %s2387, 256, %s2385, %s2357, 128, 128, 8
        $region84: #{tpu_custom_call.1} parent=47 // pred_fallthru
          _
      $region48: #{tpu_custom_call.1} parent=5 // pred_fallthru
        _
      %p2393 = scmp.le.s32.totalorder 2, %s26
      // Predicated region
      $region85: #{tpu_custom_call.1} parent=5 // pred_check
        %p2394 = pneg %p2393
      $region86: #{tpu_custom_call.1} parent=5 // pred_check_branch
        %2396 = sbr.rel (%p2394) target = $region88
      $region87: #{tpu_custom_call.1} parent=5 // pred_region
        %s2397 = ssub.s32 %s26, 2
        // Predicated region
        $region89: #{tpu_custom_call.1} parent=87 // pred_check
          %p2398 = pneg %p231
        $region90: #{tpu_custom_call.1} parent=87 // pred_check_branch
          %2400 = sbr.rel (%p2398) target = $region92
        $region91: #{tpu_custom_call.1} parent=87 // pred_region
          %s2401 = sand.u32 %s216, 1
          %s2402 = scalar_lea.sflag [#allocation5], %s2401
          %s2403 = sand.u32 %s216, 1
          %s2404 = smul.addr %s2403, 128
          %s2405 = scalar_lea.vmem [#allocation12], %s2404
          %2406 = dma.done %s2402, 2048
        $region92: #{tpu_custom_call.1} parent=87 // pred_fallthru
          _
        // Predicated region
        $region93: #{tpu_custom_call.1} parent=87 // pred_check
          %p2407 = pneg %p257
        $region94: #{tpu_custom_call.1} parent=87 // pred_check_branch
          %2409 = sbr.rel (%p2407) target = $region96
        $region95: #{tpu_custom_call.1} parent=87 // pred_region
          %s2410 = sand.u32 %s242, 1
          %s2411 = scalar_lea.sflag [#allocation14], %s2410
          %s2412 = sand.u32 %s242, 1
          %s2413 = smul.addr %s2412, 16
          %s2414 = scalar_lea.vmem [#allocation13], %s2413
          %2415 = dma.done %s2411, 256
        $region96: #{tpu_custom_call.1} parent=87 // pred_fallthru
          _
      $region88: #{tpu_custom_call.1} parent=5 // pred_fallthru
        _
    $region6: #{tpu_custom_call.1} parent=1 // loop_footer
      %s30 = sadd.s32 1, %s26
    $region7: #{tpu_custom_call.1} parent=1 // loop_footer_branch
      %25 = sbr.rel target = $region3
    $region8: #{tpu_custom_call.1} parent=1 // loop_exit
      _
    %2416 = vsyncpa [#allocation4], 1
    %s2417 = scalar_lea.sflag [#allocation4], 1
    %2418 = vsyncpa %s2417, 1
    %2419 = vsyncpa [#allocation7], 1
    %2420 = vsyncpa [#allocation10], 1
    %2421 = vsyncpa [#allocation5], 1
    %s2422 = scalar_lea.sflag [#allocation5], 1
    %2423 = vsyncpa %s2422, 1
    %2424 = vsyncpa [#allocation14], 1
    %s2425 = scalar_lea.sflag [#allocation14], 1
    %2426 = vsyncpa %s2425, 1

</llo_original>
